<compile_context>
chip_gen: v7x
topology: tpu7x:2x2x1
jax: 0.10.0
libtpu: 0.0.40
codegen_flags: <defaults>
</compile_context>

<pallas_src>
import jax
import jax.numpy as jnp
from jax.experimental import pallas as pl
from jax.experimental.pallas import tpu as pltpu


# ---------------------------------------------------------------------------
# Fused kernel: all LSTM layers + classifier linear, single invocation.
# ---------------------------------------------------------------------------
def _make_fused_kernel(T, B_pad, H, num_layers):
    """Build the fused LSTM(+linear) kernel for static T/B_pad/H/num_layers."""

    def kernel(*refs):
        # refs = [x2d, (w_ih, w_hh, b) * L, w_cls, b_cls,
        #         out, gx_sc, (hseq_sc if L > 1)]
        n_in = 1 + 3 * num_layers + 2
        x_ref = refs[0]
        lstm_refs = refs[1:1 + 3 * num_layers]
        w_cls_ref = refs[1 + 3 * num_layers]
        b_cls_ref = refs[2 + 3 * num_layers]
        out_ref = refs[n_in]
        gx_sc = refs[n_in + 1]                                   # (T*B_pad, 4H) VMEM
        hseq_sc = refs[n_in + 2] if num_layers > 1 else None     # (T*B_pad, H)  VMEM

        # Per-quadrant affine applied after the single full-vreg tanh:
        #   i/f/o:  sigmoid(z) = 0.5 * tanh(z/2) + 0.5        (z unscaled)
        #   g    :  tanh(z)    = tanh((2z)/2)                 (2z stored via weight pre-scale)
        lane = jax.lax.broadcasted_iota(jnp.int32, (1, 4 * H), 1)
        is_g = (lane >= 2 * H) & (lane < 3 * H)
        scale_vec = jnp.where(is_g, 1.0, 0.5).astype(jnp.float32)
        off_vec = jnp.where(is_g, 0.0, 0.5).astype(jnp.float32)

        seq = x_ref[...]                              # (T*B_pad, D_in), row = t*B_pad + b
        h_final = None
        for layer in range(num_layers):
            w_ih = lstm_refs[3 * layer][...]          # (D_in, 4H)  (g cols pre-scaled x2)
            w_hh = lstm_refs[3 * layer + 1][...]      # (H, 4H)     (g cols pre-scaled x2)
            bias = lstm_refs[3 * layer + 2][...]      # (1, 4H)     (g cols pre-scaled x2)

            # Hoisted input projection: ONE MXU call covers all T timesteps; parked in
            # VMEM scratch so it isn't kept live in vregs across the unrolled loop.
            # (At scale: cast seq/w_ih to bf16 with preferred_element_type=f32, and chunk
            #  this over T to respect v7x's smaller 64 MiB VMEM.)
            gx_sc[...] = jnp.dot(seq, w_ih, preferred_element_type=jnp.float32) + bias

            h = jnp.zeros((B_pad, H), jnp.float32)
            c = jnp.zeros((B_pad, H), jnp.float32)
            store_seq = layer < num_layers - 1        # last layer: only h_final is needed
            # Static full unroll (T small).  Switch to lax.fori_loop(..., unroll=2..4)
            # reading gx_sc[t*B_pad:(t+1)*B_pad] if T grows beyond ~16-32.
            for t in range(T):
                # Only the tiny h @ W_hh matmul stays on the serial path.
                # TODO(synk): micro-opt — stage w_hh in the MXU across the recurrence via
                # pltpu.matmul_push_rhs/matmul_acc_lhs/matmul_pop (verify in bundle dump).
                g = gx_sc[t * B_pad:(t + 1) * B_pad, :] + jnp.dot(
                    h, w_hh, preferred_element_type=jnp.float32)
                a = jnp.tanh(0.5 * g)                 # ONE EUP op for all 4 gates
                act = a * scale_vec + off_vec         # full-vreg affine, THEN slice
                i = act[:, 0 * H:1 * H]
                f = act[:, 1 * H:2 * H]
                gg = act[:, 2 * H:3 * H]
                o = act[:, 3 * H:4 * H]
                c = f * c + i * gg
                h = o * jnp.tanh(c)                   # second (and last) EUP op per step
                if store_seq:
                    hseq_sc[t * B_pad:(t + 1) * B_pad, :] = h   # sublane-aligned store
            h_final = h
            if store_seq:
                seq = hseq_sc[...]                    # next layer's (T*B_pad, H) input

        out_ref[...] = (jnp.dot(h_final, w_cls_ref[...],
                                preferred_element_type=jnp.float32)
                        + b_cls_ref[...])

    return kernel


# ---------------------------------------------------------------------------
# Wrapper: single grid-less pallas_call for the whole forward pass.
# ---------------------------------------------------------------------------
def _prescale_gate_columns(lstm_params):
    """Scale the g-gate (cell-candidate) quadrant of W_ih / W_hh / bias by 2 so the
    kernel can compute all four gate activations with a single tanh(z/2)."""
    scaled = []
    for (w_ih, w_hh, b) in lstm_params:
        H = w_hh.shape[0]
        gscale = jnp.concatenate([
            jnp.ones((2 * H,), jnp.float32),
            jnp.full((H,), 2.0, jnp.float32),
            jnp.ones((H,), jnp.float32)])
        scaled.append((w_ih * gscale, w_hh * gscale, b * gscale))
    return scaled


def lstm_classifier_forward(params, x):
    """x: (B, T, input_dim) float32, batch_first like the PyTorch module."""
    B, T, D = x.shape
    lstm = params["lstm"]
    num_layers = len(lstm)
    H = lstm[0][1].shape[0]
    O = params["w_cls"].shape[1]

    # Sublane-align the batch (pad B -> multiple of 8) so every per-step slice/store
    # inside the kernel is (8,128)-tile aligned.  Padded rows are computed and discarded.
    B_pad = max(8, ((B + 7) // 8) * 8)
    x_p = jnp.pad(x, ((0, B_pad - B), (0, 0), (0, 0)))
    # Time-major flatten: row t*B_pad + b corresponds to sequence position (t, b).
    x2d = jnp.transpose(x_p, (1, 0, 2)).reshape(T * B_pad, D)

    flat_w = [w for layer in _prescale_gate_columns(lstm) for w in layer]

    scratch = [pltpu.VMEM((T * B_pad, 4 * H), jnp.float32)]      # hoisted gate pre-acts
    if num_layers > 1:
        scratch.append(pltpu.VMEM((T * B_pad, H), jnp.float32))  # inter-layer h sequence

    # Grid-less single call: the whole problem fits comfortably in VMEM at these sizes.
    # (On v7x with a large batch, add a batch grid axis with
    #  dimension_semantics=("parallel",) so both TensorCores are used.)
    out_pad = pl.pallas_call(
        _make_fused_kernel(T, B_pad, H, num_layers),
        out_shape=jax.ShapeDtypeStruct((B_pad, O), jnp.float32),
        scratch_shapes=scratch,
    )(x2d, *flat_w, params["w_cls"], params["b_cls"])
    return out_pad[:B]


# ---------------------------------------------------------------------------
# Deterministic parameter init (mirrors PyTorch shapes; uniform(-1/sqrt(H), ..))
# ---------------------------------------------------------------------------
def init_params(key, input_dim, hidden_dim, output_dim, num_layers):
    bound = 1.0 / jnp.sqrt(jnp.asarray(hidden_dim, jnp.float32))
    lstm_params = []
    for layer in range(num_layers):
        d_in = input_dim if layer == 0 else hidden_dim
        key, k1, k2, k3, k4 = jax.random.split(key, 5)
        # PyTorch stores weight_ih as (4H, d_in); we pre-transpose to (d_in, 4H).
        w_ih = jax.random.uniform(k1, (d_in, 4 * hidden_dim), jnp.float32,
                                  -bound, bound)
        w_hh = jax.random.uniform(k2, (hidden_dim, 4 * hidden_dim), jnp.float32,
                                  -bound, bound)
        b_ih = jax.random.uniform(k3, (4 * hidden_dim,), jnp.float32, -bound, bound)
        b_hh = jax.random.uniform(k4, (4 * hidden_dim,), jnp.float32, -bound, bound)
        b = (b_ih + b_hh).reshape(1, 4 * hidden_dim)
        lstm_params.append((w_ih, w_hh, b))
    key, k5, k6 = jax.random.split(key, 3)
    # Linear: PyTorch weight is (O, H); pre-transpose to (H, O).
    w_cls = jax.random.uniform(k5, (hidden_dim, output_dim), jnp.float32,
                               -bound, bound)
    b_cls = jax.random.uniform(k6, (output_dim,), jnp.float32,
                               -bound, bound).reshape(1, output_dim)
    return {"lstm": lstm_params, "w_cls": w_cls, "b_cls": b_cls}


# ---------------------------------------------------------------------------
# Pure-JAX reference (lax.scan, unscaled params) for the correctness check
# ---------------------------------------------------------------------------
def lstm_classifier_ref(params, x):
    h_in = jnp.transpose(x, (1, 0, 2))
    h_final = None
    for (w_ih, w_hh, b) in params["lstm"]:
        H = w_hh.shape[0]
        B = h_in.shape[1]

        def step(carry, x_t, w_ih=w_ih, w_hh=w_hh, b=b, H=H):
            h, c = carry
            gates = x_t @ w_ih + h @ w_hh + b[0]
            i = jax.nn.sigmoid(gates[:, 0 * H:1 * H])
            f = jax.nn.sigmoid(gates[:, 1 * H:2 * H])
            g = jnp.tanh(gates[:, 2 * H:3 * H])
            o = jax.nn.sigmoid(gates[:, 3 * H:4 * H])
            c = f * c + i * g
            h = o * jnp.tanh(c)
            return (h, c), h

        init = (jnp.zeros((B, H), jnp.float32), jnp.zeros((B, H), jnp.float32))
        (h_final, _), h_seq = jax.lax.scan(step, init, h_in)
        h_in = h_seq
    return h_final @ params["w_cls"] + params["b_cls"][0]


if __name__ == "__main__":
    B, T = 2, 8
    INPUT_DIM, HIDDEN_DIM, OUTPUT_DIM, NUM_LAYERS = 16, 32, 4, 2

    key = jax.random.PRNGKey(0)
    key, xkey = jax.random.split(key)
    x = jax.random.normal(xkey, (B, T, INPUT_DIM), jnp.float32)
    params = init_params(key, INPUT_DIM, HIDDEN_DIM, OUTPUT_DIM, NUM_LAYERS)

    out = jax.block_until_ready(lstm_classifier_forward(params, x))
    ref = jax.block_until_ready(lstm_classifier_ref(params, x))

    assert out.shape == (B, OUTPUT_DIM)
    assert jnp.allclose(out, ref, rtol=1e-4, atol=1e-4), (out, ref)

    print("KERNEL_OK")
</pallas_src>

<mosaic_0001>
module attributes {stable_mosaic.version = 11 : i64} {
  func.func @kernel(%arg0: memref<64x16xf32, #tpu.memory_space<vmem>>, %arg1: memref<16x128xf32, #tpu.memory_space<vmem>>, %arg2: memref<32x128xf32, #tpu.memory_space<vmem>>, %arg3: memref<1x128xf32, #tpu.memory_space<vmem>>, %arg4: memref<32x128xf32, #tpu.memory_space<vmem>>, %arg5: memref<32x128xf32, #tpu.memory_space<vmem>>, %arg6: memref<1x128xf32, #tpu.memory_space<vmem>>, %arg7: memref<32x4xf32, #tpu.memory_space<vmem>>, %arg8: memref<1x4xf32, #tpu.memory_space<vmem>>, %arg9: memref<8x4xf32, #tpu.memory_space<vmem>>, %arg10: memref<64x128xf32, #tpu.memory_space<vmem>>, %arg11: memref<64x32xf32, #tpu.memory_space<vmem>>) attributes {dimension_semantics = [], scalar_prefetch = 0 : i64, scratch_operands = 2 : i64, tpu.core_type = #tpu.core_type<tc>} {
    %0 = tpu.iota {dimensions = array<i32: 1>} : vector<1x128xi32>
    %c64_i32 = arith.constant 64 : i32
    %1 = vector.broadcast %c64_i32 : i32 to vector<1x128xi32>
    %2 = arith.cmpi sge, %0, %1 : vector<1x128xi32>
    %c96_i32 = arith.constant 96 : i32
    %3 = vector.broadcast %c96_i32 : i32 to vector<1x128xi32>
    %4 = arith.cmpi slt, %0, %3 : vector<1x128xi32>
    %5 = arith.andi %2, %4 : vector<1x128xi1>
    %cst = arith.constant 1.000000e+00 : f32
    %cst_0 = arith.constant 5.000000e-01 : f32
    %6 = vector.broadcast %cst : f32 to vector<1x128xf32>
    %7 = vector.broadcast %cst_0 : f32 to vector<1x128xf32>
    %8 = arith.select %5, %6, %7 : vector<1x128xi1>, vector<1x128xf32>
    %cst_1 = arith.constant 0.000000e+00 : f32
    %cst_2 = arith.constant 5.000000e-01 : f32
    %9 = vector.broadcast %cst_1 : f32 to vector<1x128xf32>
    %10 = vector.broadcast %cst_2 : f32 to vector<1x128xf32>
    %11 = arith.select %5, %9, %10 : vector<1x128xi1>, vector<1x128xf32>
    %c0 = arith.constant 0 : index
    %c0_3 = arith.constant 0 : index
    %12 = vector.load %arg0[%c0, %c0_3] : memref<64x16xf32, #tpu.memory_space<vmem>>, vector<64x16xf32>
    %c0_4 = arith.constant 0 : index
    %c0_5 = arith.constant 0 : index
    %13 = vector.load %arg1[%c0_4, %c0_5] : memref<16x128xf32, #tpu.memory_space<vmem>>, vector<16x128xf32>
    %c0_6 = arith.constant 0 : index
    %c0_7 = arith.constant 0 : index
    %14 = vector.load %arg2[%c0_6, %c0_7] : memref<32x128xf32, #tpu.memory_space<vmem>>, vector<32x128xf32>
    %c0_8 = arith.constant 0 : index
    %c0_9 = arith.constant 0 : index
    %15 = vector.load %arg3[%c0_8, %c0_9] : memref<1x128xf32, #tpu.memory_space<vmem>>, vector<1x128xf32>
    %cst_10 = arith.constant dense<0.000000e+00> : vector<64x128xf32>
    %16 = tpu.matmul %12, %13, %cst_10 {dimension_numbers = #tpu.dot_dimension_numbers<[1], [0], [0], [1], [0, 0, 1, 1], [], []>} : vector<64x16xf32>, vector<16x128xf32>, vector<64x128xf32> -> vector<64x128xf32>
    %17 = vector.broadcast %15 : vector<1x128xf32> to vector<64x128xf32>
    %18 = arith.addf %16, %17 : vector<64x128xf32>
    %c0_11 = arith.constant 0 : index
    %c0_12 = arith.constant 0 : index
    %19 = vector.load %arg10[%c0_11, %c0_12] : memref<64x128xf32, #tpu.memory_space<vmem>>, vector<64x128xf32>
    tpu.vector_store %arg10[%c0_11, %c0_12], %18 {strides = array<i32>} : memref<64x128xf32, #tpu.memory_space<vmem>>, vector<64x128xf32>,
    %cst_13 = arith.constant 0.000000e+00 : f32
    %20 = vector.broadcast %cst_13 : f32 to vector<8x32xf32>
    %cst_14 = arith.constant 0.000000e+00 : f32
    %21 = vector.broadcast %cst_14 : f32 to vector<8x32xf32>
    %c0_15 = arith.constant 0 : index
    %c0_16 = arith.constant 0 : index
    %22 = vector.load %arg10[%c0_15, %c0_16] : memref<64x128xf32, #tpu.memory_space<vmem>>, vector<8x128xf32>
    %cst_17 = arith.constant dense<0.000000e+00> : vector<8x128xf32>
    %23 = tpu.matmul %20, %14, %cst_17 {dimension_numbers = #tpu.dot_dimension_numbers<[1], [0], [0], [1], [0, 0, 1, 1], [], []>} : vector<8x32xf32>, vector<32x128xf32>, vector<8x128xf32> -> vector<8x128xf32>
    %24 = arith.addf %22, %23 : vector<8x128xf32>
    %cst_18 = arith.constant 5.000000e-01 : f32
    %25 = vector.broadcast %cst_18 : f32 to vector<8x128xf32>
    %26 = arith.mulf %25, %24 : vector<8x128xf32>
    %27 = math.tanh %26 : vector<8x128xf32>
    %28 = vector.broadcast %8 : vector<1x128xf32> to vector<8x128xf32>
    %29 = arith.mulf %27, %28 : vector<8x128xf32>
    %30 = vector.broadcast %11 : vector<1x128xf32> to vector<8x128xf32>
    %31 = arith.addf %29, %30 : vector<8x128xf32>
    %32 = vector.extract_strided_slice %31 {offsets = [0, 0], sizes = [8, 32], strides = [1, 1]} : vector<8x128xf32> to vector<8x32xf32>
    %33 = vector.extract_strided_slice %31 {offsets = [0, 32], sizes = [8, 32], strides = [1, 1]} : vector<8x128xf32> to vector<8x32xf32>
    %34 = vector.extract_strided_slice %31 {offsets = [0, 64], sizes = [8, 32], strides = [1, 1]} : vector<8x128xf32> to vector<8x32xf32>
    %35 = vector.extract_strided_slice %31 {offsets = [0, 96], sizes = [8, 32], strides = [1, 1]} : vector<8x128xf32> to vector<8x32xf32>
    %36 = arith.mulf %33, %21 : vector<8x32xf32>
    %37 = arith.mulf %32, %34 : vector<8x32xf32>
    %38 = arith.addf %36, %37 : vector<8x32xf32>
    %39 = math.tanh %38 : vector<8x32xf32>
    %40 = arith.mulf %35, %39 : vector<8x32xf32>
    %c0_19 = arith.constant 0 : index
    %c0_20 = arith.constant 0 : index
    %41 = vector.load %arg11[%c0_19, %c0_20] : memref<64x32xf32, #tpu.memory_space<vmem>>, vector<8x32xf32>
    tpu.vector_store %arg11[%c0_19, %c0_20], %40 {strides = array<i32>} : memref<64x32xf32, #tpu.memory_space<vmem>>, vector<8x32xf32>,
    %c8 = arith.constant 8 : index
    %c0_21 = arith.constant 0 : index
    %42 = vector.load %arg10[%c8, %c0_21] : memref<64x128xf32, #tpu.memory_space<vmem>>, vector<8x128xf32>
    %cst_22 = arith.constant dense<0.000000e+00> : vector<8x128xf32>
    %43 = tpu.matmul %40, %14, %cst_22 {dimension_numbers = #tpu.dot_dimension_numbers<[1], [0], [0], [1], [0, 0, 1, 1], [], []>} : vector<8x32xf32>, vector<32x128xf32>, vector<8x128xf32> -> vector<8x128xf32>
    %44 = arith.addf %42, %43 : vector<8x128xf32>
    %cst_23 = arith.constant 5.000000e-01 : f32
    %45 = vector.broadcast %cst_23 : f32 to vector<8x128xf32>
    %46 = arith.mulf %45, %44 : vector<8x128xf32>
    %47 = math.tanh %46 : vector<8x128xf32>
    %48 = vector.broadcast %8 : vector<1x128xf32> to vector<8x128xf32>
    %49 = arith.mulf %47, %48 : vector<8x128xf32>
    %50 = vector.broadcast %11 : vector<1x128xf32> to vector<8x128xf32>
    %51 = arith.addf %49, %50 : vector<8x128xf32>
    %52 = vector.extract_strided_slice %51 {offsets = [0, 0], sizes = [8, 32], strides = [1, 1]} : vector<8x128xf32> to vector<8x32xf32>
    %53 = vector.extract_strided_slice %51 {offsets = [0, 32], sizes = [8, 32], strides = [1, 1]} : vector<8x128xf32> to vector<8x32xf32>
    %54 = vector.extract_strided_slice %51 {offsets = [0, 64], sizes = [8, 32], strides = [1, 1]} : vector<8x128xf32> to vector<8x32xf32>
    %55 = vector.extract_strided_slice %51 {offsets = [0, 96], sizes = [8, 32], strides = [1, 1]} : vector<8x128xf32> to vector<8x32xf32>
    %56 = arith.mulf %53, %38 : vector<8x32xf32>
    %57 = arith.mulf %52, %54 : vector<8x32xf32>
    %58 = arith.addf %56, %57 : vector<8x32xf32>
    %59 = math.tanh %58 : vector<8x32xf32>
    %60 = arith.mulf %55, %59 : vector<8x32xf32>
    %c8_24 = arith.constant 8 : index
    %c0_25 = arith.constant 0 : index
    %61 = vector.load %arg11[%c8_24, %c0_25] : memref<64x32xf32, #tpu.memory_space<vmem>>, vector<8x32xf32>
    tpu.vector_store %arg11[%c8_24, %c0_25], %60 {strides = array<i32>} : memref<64x32xf32, #tpu.memory_space<vmem>>, vector<8x32xf32>,
    %c16 = arith.constant 16 : index
    %c0_26 = arith.constant 0 : index
    %62 = vector.load %arg10[%c16, %c0_26] : memref<64x128xf32, #tpu.memory_space<vmem>>, vector<8x128xf32>
    %cst_27 = arith.constant dense<0.000000e+00> : vector<8x128xf32>
    %63 = tpu.matmul %60, %14, %cst_27 {dimension_numbers = #tpu.dot_dimension_numbers<[1], [0], [0], [1], [0, 0, 1, 1], [], []>} : vector<8x32xf32>, vector<32x128xf32>, vector<8x128xf32> -> vector<8x128xf32>
    %64 = arith.addf %62, %63 : vector<8x128xf32>
    %cst_28 = arith.constant 5.000000e-01 : f32
    %65 = vector.broadcast %cst_28 : f32 to vector<8x128xf32>
    %66 = arith.mulf %65, %64 : vector<8x128xf32>
    %67 = math.tanh %66 : vector<8x128xf32>
    %68 = vector.broadcast %8 : vector<1x128xf32> to vector<8x128xf32>
    %69 = arith.mulf %67, %68 : vector<8x128xf32>
    %70 = vector.broadcast %11 : vector<1x128xf32> to vector<8x128xf32>
    %71 = arith.addf %69, %70 : vector<8x128xf32>
    %72 = vector.extract_strided_slice %71 {offsets = [0, 0], sizes = [8, 32], strides = [1, 1]} : vector<8x128xf32> to vector<8x32xf32>
    %73 = vector.extract_strided_slice %71 {offsets = [0, 32], sizes = [8, 32], strides = [1, 1]} : vector<8x128xf32> to vector<8x32xf32>
    %74 = vector.extract_strided_slice %71 {offsets = [0, 64], sizes = [8, 32], strides = [1, 1]} : vector<8x128xf32> to vector<8x32xf32>
    %75 = vector.extract_strided_slice %71 {offsets = [0, 96], sizes = [8, 32], strides = [1, 1]} : vector<8x128xf32> to vector<8x32xf32>
    %76 = arith.mulf %73, %58 : vector<8x32xf32>
    %77 = arith.mulf %72, %74 : vector<8x32xf32>
    %78 = arith.addf %76, %77 : vector<8x32xf32>
    %79 = math.tanh %78 : vector<8x32xf32>
    %80 = arith.mulf %75, %79 : vector<8x32xf32>
    %c16_29 = arith.constant 16 : index
    %c0_30 = arith.constant 0 : index
    %81 = vector.load %arg11[%c16_29, %c0_30] : memref<64x32xf32, #tpu.memory_space<vmem>>, vector<8x32xf32>
    tpu.vector_store %arg11[%c16_29, %c0_30], %80 {strides = array<i32>} : memref<64x32xf32, #tpu.memory_space<vmem>>, vector<8x32xf32>,
    %c24 = arith.constant 24 : index
    %c0_31 = arith.constant 0 : index
    %82 = vector.load %arg10[%c24, %c0_31] : memref<64x128xf32, #tpu.memory_space<vmem>>, vector<8x128xf32>
    %cst_32 = arith.constant dense<0.000000e+00> : vector<8x128xf32>
    %83 = tpu.matmul %80, %14, %cst_32 {dimension_numbers = #tpu.dot_dimension_numbers<[1], [0], [0], [1], [0, 0, 1, 1], [], []>} : vector<8x32xf32>, vector<32x128xf32>, vector<8x128xf32> -> vector<8x128xf32>
    %84 = arith.addf %82, %83 : vector<8x128xf32>
    %cst_33 = arith.constant 5.000000e-01 : f32
    %85 = vector.broadcast %cst_33 : f32 to vector<8x128xf32>
    %86 = arith.mulf %85, %84 : vector<8x128xf32>
    %87 = math.tanh %86 : vector<8x128xf32>
    %88 = vector.broadcast %8 : vector<1x128xf32> to vector<8x128xf32>
    %89 = arith.mulf %87, %88 : vector<8x128xf32>
    %90 = vector.broadcast %11 : vector<1x128xf32> to vector<8x128xf32>
    %91 = arith.addf %89, %90 : vector<8x128xf32>
    %92 = vector.extract_strided_slice %91 {offsets = [0, 0], sizes = [8, 32], strides = [1, 1]} : vector<8x128xf32> to vector<8x32xf32>
    %93 = vector.extract_strided_slice %91 {offsets = [0, 32], sizes = [8, 32], strides = [1, 1]} : vector<8x128xf32> to vector<8x32xf32>
    %94 = vector.extract_strided_slice %91 {offsets = [0, 64], sizes = [8, 32], strides = [1, 1]} : vector<8x128xf32> to vector<8x32xf32>
    %95 = vector.extract_strided_slice %91 {offsets = [0, 96], sizes = [8, 32], strides = [1, 1]} : vector<8x128xf32> to vector<8x32xf32>
    %96 = arith.mulf %93, %78 : vector<8x32xf32>
    %97 = arith.mulf %92, %94 : vector<8x32xf32>
    %98 = arith.addf %96, %97 : vector<8x32xf32>
    %99 = math.tanh %98 : vector<8x32xf32>
    %100 = arith.mulf %95, %99 : vector<8x32xf32>
    %c24_34 = arith.constant 24 : index
    %c0_35 = arith.constant 0 : index
    %101 = vector.load %arg11[%c24_34, %c0_35] : memref<64x32xf32, #tpu.memory_space<vmem>>, vector<8x32xf32>
    tpu.vector_store %arg11[%c24_34, %c0_35], %100 {strides = array<i32>} : memref<64x32xf32, #tpu.memory_space<vmem>>, vector<8x32xf32>,
    %c32 = arith.constant 32 : index
    %c0_36 = arith.constant 0 : index
    %102 = vector.load %arg10[%c32, %c0_36] : memref<64x128xf32, #tpu.memory_space<vmem>>, vector<8x128xf32>
    %cst_37 = arith.constant dense<0.000000e+00> : vector<8x128xf32>
    %103 = tpu.matmul %100, %14, %cst_37 {dimension_numbers = #tpu.dot_dimension_numbers<[1], [0], [0], [1], [0, 0, 1, 1], [], []>} : vector<8x32xf32>, vector<32x128xf32>, vector<8x128xf32> -> vector<8x128xf32>
    %104 = arith.addf %102, %103 : vector<8x128xf32>
    %cst_38 = arith.constant 5.000000e-01 : f32
    %105 = vector.broadcast %cst_38 : f32 to vector<8x128xf32>
    %106 = arith.mulf %105, %104 : vector<8x128xf32>
    %107 = math.tanh %106 : vector<8x128xf32>
    %108 = vector.broadcast %8 : vector<1x128xf32> to vector<8x128xf32>
    %109 = arith.mulf %107, %108 : vector<8x128xf32>
    %110 = vector.broadcast %11 : vector<1x128xf32> to vector<8x128xf32>
    %111 = arith.addf %109, %110 : vector<8x128xf32>
    %112 = vector.extract_strided_slice %111 {offsets = [0, 0], sizes = [8, 32], strides = [1, 1]} : vector<8x128xf32> to vector<8x32xf32>
    %113 = vector.extract_strided_slice %111 {offsets = [0, 32], sizes = [8, 32], strides = [1, 1]} : vector<8x128xf32> to vector<8x32xf32>
    %114 = vector.extract_strided_slice %111 {offsets = [0, 64], sizes = [8, 32], strides = [1, 1]} : vector<8x128xf32> to vector<8x32xf32>
    %115 = vector.extract_strided_slice %111 {offsets = [0, 96], sizes = [8, 32], strides = [1, 1]} : vector<8x128xf32> to vector<8x32xf32>
    %116 = arith.mulf %113, %98 : vector<8x32xf32>
    %117 = arith.mulf %112, %114 : vector<8x32xf32>
    %118 = arith.addf %116, %117 : vector<8x32xf32>
    %119 = math.tanh %118 : vector<8x32xf32>
    %120 = arith.mulf %115, %119 : vector<8x32xf32>
    %c32_39 = arith.constant 32 : index
    %c0_40 = arith.constant 0 : index
    %121 = vector.load %arg11[%c32_39, %c0_40] : memref<64x32xf32, #tpu.memory_space<vmem>>, vector<8x32xf32>
    tpu.vector_store %arg11[%c32_39, %c0_40], %120 {strides = array<i32>} : memref<64x32xf32, #tpu.memory_space<vmem>>, vector<8x32xf32>,
    %c40 = arith.constant 40 : index
    %c0_41 = arith.constant 0 : index
    %122 = vector.load %arg10[%c40, %c0_41] : memref<64x128xf32, #tpu.memory_space<vmem>>, vector<8x128xf32>
    %cst_42 = arith.constant dense<0.000000e+00> : vector<8x128xf32>
    %123 = tpu.matmul %120, %14, %cst_42 {dimension_numbers = #tpu.dot_dimension_numbers<[1], [0], [0], [1], [0, 0, 1, 1], [], []>} : vector<8x32xf32>, vector<32x128xf32>, vector<8x128xf32> -> vector<8x128xf32>
    %124 = arith.addf %122, %123 : vector<8x128xf32>
    %cst_43 = arith.constant 5.000000e-01 : f32
    %125 = vector.broadcast %cst_43 : f32 to vector<8x128xf32>
    %126 = arith.mulf %125, %124 : vector<8x128xf32>
    %127 = math.tanh %126 : vector<8x128xf32>
    %128 = vector.broadcast %8 : vector<1x128xf32> to vector<8x128xf32>
    %129 = arith.mulf %127, %128 : vector<8x128xf32>
    %130 = vector.broadcast %11 : vector<1x128xf32> to vector<8x128xf32>
    %131 = arith.addf %129, %130 : vector<8x128xf32>
    %132 = vector.extract_strided_slice %131 {offsets = [0, 0], sizes = [8, 32], strides = [1, 1]} : vector<8x128xf32> to vector<8x32xf32>
    %133 = vector.extract_strided_slice %131 {offsets = [0, 32], sizes = [8, 32], strides = [1, 1]} : vector<8x128xf32> to vector<8x32xf32>
    %134 = vector.extract_strided_slice %131 {offsets = [0, 64], sizes = [8, 32], strides = [1, 1]} : vector<8x128xf32> to vector<8x32xf32>
    %135 = vector.extract_strided_slice %131 {offsets = [0, 96], sizes = [8, 32], strides = [1, 1]} : vector<8x128xf32> to vector<8x32xf32>
    %136 = arith.mulf %133, %118 : vector<8x32xf32>
    %137 = arith.mulf %132, %134 : vector<8x32xf32>
    %138 = arith.addf %136, %137 : vector<8x32xf32>
    %139 = math.tanh %138 : vector<8x32xf32>
    %140 = arith.mulf %135, %139 : vector<8x32xf32>
    %c40_44 = arith.constant 40 : index
    %c0_45 = arith.constant 0 : index
    %141 = vector.load %arg11[%c40_44, %c0_45] : memref<64x32xf32, #tpu.memory_space<vmem>>, vector<8x32xf32>
    tpu.vector_store %arg11[%c40_44, %c0_45], %140 {strides = array<i32>} : memref<64x32xf32, #tpu.memory_space<vmem>>, vector<8x32xf32>,
    %c48 = arith.constant 48 : index
    %c0_46 = arith.constant 0 : index
    %142 = vector.load %arg10[%c48, %c0_46] : memref<64x128xf32, #tpu.memory_space<vmem>>, vector<8x128xf32>
    %cst_47 = arith.constant dense<0.000000e+00> : vector<8x128xf32>
    %143 = tpu.matmul %140, %14, %cst_47 {dimension_numbers = #tpu.dot_dimension_numbers<[1], [0], [0], [1], [0, 0, 1, 1], [], []>} : vector<8x32xf32>, vector<32x128xf32>, vector<8x128xf32> -> vector<8x128xf32>
    %144 = arith.addf %142, %143 : vector<8x128xf32>
    %cst_48 = arith.constant 5.000000e-01 : f32
    %145 = vector.broadcast %cst_48 : f32 to vector<8x128xf32>
    %146 = arith.mulf %145, %144 : vector<8x128xf32>
    %147 = math.tanh %146 : vector<8x128xf32>
    %148 = vector.broadcast %8 : vector<1x128xf32> to vector<8x128xf32>
    %149 = arith.mulf %147, %148 : vector<8x128xf32>
    %150 = vector.broadcast %11 : vector<1x128xf32> to vector<8x128xf32>
    %151 = arith.addf %149, %150 : vector<8x128xf32>
    %152 = vector.extract_strided_slice %151 {offsets = [0, 0], sizes = [8, 32], strides = [1, 1]} : vector<8x128xf32> to vector<8x32xf32>
    %153 = vector.extract_strided_slice %151 {offsets = [0, 32], sizes = [8, 32], strides = [1, 1]} : vector<8x128xf32> to vector<8x32xf32>
    %154 = vector.extract_strided_slice %151 {offsets = [0, 64], sizes = [8, 32], strides = [1, 1]} : vector<8x128xf32> to vector<8x32xf32>
    %155 = vector.extract_strided_slice %151 {offsets = [0, 96], sizes = [8, 32], strides = [1, 1]} : vector<8x128xf32> to vector<8x32xf32>
    %156 = arith.mulf %153, %138 : vector<8x32xf32>
    %157 = arith.mulf %152, %154 : vector<8x32xf32>
    %158 = arith.addf %156, %157 : vector<8x32xf32>
    %159 = math.tanh %158 : vector<8x32xf32>
    %160 = arith.mulf %155, %159 : vector<8x32xf32>
    %c48_49 = arith.constant 48 : index
    %c0_50 = arith.constant 0 : index
    %161 = vector.load %arg11[%c48_49, %c0_50] : memref<64x32xf32, #tpu.memory_space<vmem>>, vector<8x32xf32>
    tpu.vector_store %arg11[%c48_49, %c0_50], %160 {strides = array<i32>} : memref<64x32xf32, #tpu.memory_space<vmem>>, vector<8x32xf32>,
    %c56 = arith.constant 56 : index
    %c0_51 = arith.constant 0 : index
    %162 = vector.load %arg10[%c56, %c0_51] : memref<64x128xf32, #tpu.memory_space<vmem>>, vector<8x128xf32>
    %cst_52 = arith.constant dense<0.000000e+00> : vector<8x128xf32>
    %163 = tpu.matmul %160, %14, %cst_52 {dimension_numbers = #tpu.dot_dimension_numbers<[1], [0], [0], [1], [0, 0, 1, 1], [], []>} : vector<8x32xf32>, vector<32x128xf32>, vector<8x128xf32> -> vector<8x128xf32>
    %164 = arith.addf %162, %163 : vector<8x128xf32>
    %cst_53 = arith.constant 5.000000e-01 : f32
    %165 = vector.broadcast %cst_53 : f32 to vector<8x128xf32>
    %166 = arith.mulf %165, %164 : vector<8x128xf32>
    %167 = math.tanh %166 : vector<8x128xf32>
    %168 = vector.broadcast %8 : vector<1x128xf32> to vector<8x128xf32>
    %169 = arith.mulf %167, %168 : vector<8x128xf32>
    %170 = vector.broadcast %11 : vector<1x128xf32> to vector<8x128xf32>
    %171 = arith.addf %169, %170 : vector<8x128xf32>
    %172 = vector.extract_strided_slice %171 {offsets = [0, 0], sizes = [8, 32], strides = [1, 1]} : vector<8x128xf32> to vector<8x32xf32>
    %173 = vector.extract_strided_slice %171 {offsets = [0, 32], sizes = [8, 32], strides = [1, 1]} : vector<8x128xf32> to vector<8x32xf32>
    %174 = vector.extract_strided_slice %171 {offsets = [0, 64], sizes = [8, 32], strides = [1, 1]} : vector<8x128xf32> to vector<8x32xf32>
    %175 = vector.extract_strided_slice %171 {offsets = [0, 96], sizes = [8, 32], strides = [1, 1]} : vector<8x128xf32> to vector<8x32xf32>
    %176 = arith.mulf %173, %158 : vector<8x32xf32>
    %177 = arith.mulf %172, %174 : vector<8x32xf32>
    %178 = arith.addf %176, %177 : vector<8x32xf32>
    %179 = math.tanh %178 : vector<8x32xf32>
    %180 = arith.mulf %175, %179 : vector<8x32xf32>
    %c56_54 = arith.constant 56 : index
    %c0_55 = arith.constant 0 : index
    %181 = vector.load %arg11[%c56_54, %c0_55] : memref<64x32xf32, #tpu.memory_space<vmem>>, vector<8x32xf32>
    tpu.vector_store %arg11[%c56_54, %c0_55], %180 {strides = array<i32>} : memref<64x32xf32, #tpu.memory_space<vmem>>, vector<8x32xf32>,
    %c0_56 = arith.constant 0 : index
    %c0_57 = arith.constant 0 : index
    %182 = vector.load %arg11[%c0_56, %c0_57] : memref<64x32xf32, #tpu.memory_space<vmem>>, vector<64x32xf32>
    %c0_58 = arith.constant 0 : index
    %c0_59 = arith.constant 0 : index
    %183 = vector.load %arg4[%c0_58, %c0_59] : memref<32x128xf32, #tpu.memory_space<vmem>>, vector<32x128xf32>
    %c0_60 = arith.constant 0 : index
    %c0_61 = arith.constant 0 : index
    %184 = vector.load %arg5[%c0_60, %c0_61] : memref<32x128xf32, #tpu.memory_space<vmem>>, vector<32x128xf32>
    %c0_62 = arith.constant 0 : index
    %c0_63 = arith.constant 0 : index
    %185 = vector.load %arg6[%c0_62, %c0_63] : memref<1x128xf32, #tpu.memory_space<vmem>>, vector<1x128xf32>
    %cst_64 = arith.constant dense<0.000000e+00> : vector<64x128xf32>
    %186 = tpu.matmul %182, %183, %cst_64 {dimension_numbers = #tpu.dot_dimension_numbers<[1], [0], [0], [1], [0, 0, 1, 1], [], []>} : vector<64x32xf32>, vector<32x128xf32>, vector<64x128xf32> -> vector<64x128xf32>
    %187 = vector.broadcast %185 : vector<1x128xf32> to vector<64x128xf32>
    %188 = arith.addf %186, %187 : vector<64x128xf32>
    %c0_65 = arith.constant 0 : index
    %c0_66 = arith.constant 0 : index
    %189 = vector.load %arg10[%c0_65, %c0_66] : memref<64x128xf32, #tpu.memory_space<vmem>>, vector<64x128xf32>
    tpu.vector_store %arg10[%c0_65, %c0_66], %188 {strides = array<i32>} : memref<64x128xf32, #tpu.memory_space<vmem>>, vector<64x128xf32>,
    %cst_67 = arith.constant 0.000000e+00 : f32
    %190 = vector.broadcast %cst_67 : f32 to vector<8x32xf32>
    %cst_68 = arith.constant 0.000000e+00 : f32
    %191 = vector.broadcast %cst_68 : f32 to vector<8x32xf32>
    %c0_69 = arith.constant 0 : index
    %c0_70 = arith.constant 0 : index
    %192 = vector.load %arg10[%c0_69, %c0_70] : memref<64x128xf32, #tpu.memory_space<vmem>>, vector<8x128xf32>
    %cst_71 = arith.constant dense<0.000000e+00> : vector<8x128xf32>
    %193 = tpu.matmul %190, %184, %cst_71 {dimension_numbers = #tpu.dot_dimension_numbers<[1], [0], [0], [1], [0, 0, 1, 1], [], []>} : vector<8x32xf32>, vector<32x128xf32>, vector<8x128xf32> -> vector<8x128xf32>
    %194 = arith.addf %192, %193 : vector<8x128xf32>
    %cst_72 = arith.constant 5.000000e-01 : f32
    %195 = vector.broadcast %cst_72 : f32 to vector<8x128xf32>
    %196 = arith.mulf %195, %194 : vector<8x128xf32>
    %197 = math.tanh %196 : vector<8x128xf32>
    %198 = vector.broadcast %8 : vector<1x128xf32> to vector<8x128xf32>
    %199 = arith.mulf %197, %198 : vector<8x128xf32>
    %200 = vector.broadcast %11 : vector<1x128xf32> to vector<8x128xf32>
    %201 = arith.addf %199, %200 : vector<8x128xf32>
    %202 = vector.extract_strided_slice %201 {offsets = [0, 0], sizes = [8, 32], strides = [1, 1]} : vector<8x128xf32> to vector<8x32xf32>
    %203 = vector.extract_strided_slice %201 {offsets = [0, 32], sizes = [8, 32], strides = [1, 1]} : vector<8x128xf32> to vector<8x32xf32>
    %204 = vector.extract_strided_slice %201 {offsets = [0, 64], sizes = [8, 32], strides = [1, 1]} : vector<8x128xf32> to vector<8x32xf32>
    %205 = vector.extract_strided_slice %201 {offsets = [0, 96], sizes = [8, 32], strides = [1, 1]} : vector<8x128xf32> to vector<8x32xf32>
    %206 = arith.mulf %203, %191 : vector<8x32xf32>
    %207 = arith.mulf %202, %204 : vector<8x32xf32>
    %208 = arith.addf %206, %207 : vector<8x32xf32>
    %209 = math.tanh %208 : vector<8x32xf32>
    %210 = arith.mulf %205, %209 : vector<8x32xf32>
    %c8_73 = arith.constant 8 : index
    %c0_74 = arith.constant 0 : index
    %211 = vector.load %arg10[%c8_73, %c0_74] : memref<64x128xf32, #tpu.memory_space<vmem>>, vector<8x128xf32>
    %cst_75 = arith.constant dense<0.000000e+00> : vector<8x128xf32>
    %212 = tpu.matmul %210, %184, %cst_75 {dimension_numbers = #tpu.dot_dimension_numbers<[1], [0], [0], [1], [0, 0, 1, 1], [], []>} : vector<8x32xf32>, vector<32x128xf32>, vector<8x128xf32> -> vector<8x128xf32>
    %213 = arith.addf %211, %212 : vector<8x128xf32>
    %cst_76 = arith.constant 5.000000e-01 : f32
    %214 = vector.broadcast %cst_76 : f32 to vector<8x128xf32>
    %215 = arith.mulf %214, %213 : vector<8x128xf32>
    %216 = math.tanh %215 : vector<8x128xf32>
    %217 = vector.broadcast %8 : vector<1x128xf32> to vector<8x128xf32>
    %218 = arith.mulf %216, %217 : vector<8x128xf32>
    %219 = vector.broadcast %11 : vector<1x128xf32> to vector<8x128xf32>
    %220 = arith.addf %218, %219 : vector<8x128xf32>
    %221 = vector.extract_strided_slice %220 {offsets = [0, 0], sizes = [8, 32], strides = [1, 1]} : vector<8x128xf32> to vector<8x32xf32>
    %222 = vector.extract_strided_slice %220 {offsets = [0, 32], sizes = [8, 32], strides = [1, 1]} : vector<8x128xf32> to vector<8x32xf32>
    %223 = vector.extract_strided_slice %220 {offsets = [0, 64], sizes = [8, 32], strides = [1, 1]} : vector<8x128xf32> to vector<8x32xf32>
    %224 = vector.extract_strided_slice %220 {offsets = [0, 96], sizes = [8, 32], strides = [1, 1]} : vector<8x128xf32> to vector<8x32xf32>
    %225 = arith.mulf %222, %208 : vector<8x32xf32>
    %226 = arith.mulf %221, %223 : vector<8x32xf32>
    %227 = arith.addf %225, %226 : vector<8x32xf32>
    %228 = math.tanh %227 : vector<8x32xf32>
    %229 = arith.mulf %224, %228 : vector<8x32xf32>
    %c16_77 = arith.constant 16 : index
    %c0_78 = arith.constant 0 : index
    %230 = vector.load %arg10[%c16_77, %c0_78] : memref<64x128xf32, #tpu.memory_space<vmem>>, vector<8x128xf32>
    %cst_79 = arith.constant dense<0.000000e+00> : vector<8x128xf32>
    %231 = tpu.matmul %229, %184, %cst_79 {dimension_numbers = #tpu.dot_dimension_numbers<[1], [0], [0], [1], [0, 0, 1, 1], [], []>} : vector<8x32xf32>, vector<32x128xf32>, vector<8x128xf32> -> vector<8x128xf32>
    %232 = arith.addf %230, %231 : vector<8x128xf32>
    %cst_80 = arith.constant 5.000000e-01 : f32
    %233 = vector.broadcast %cst_80 : f32 to vector<8x128xf32>
    %234 = arith.mulf %233, %232 : vector<8x128xf32>
    %235 = math.tanh %234 : vector<8x128xf32>
    %236 = vector.broadcast %8 : vector<1x128xf32> to vector<8x128xf32>
    %237 = arith.mulf %235, %236 : vector<8x128xf32>
    %238 = vector.broadcast %11 : vector<1x128xf32> to vector<8x128xf32>
    %239 = arith.addf %237, %238 : vector<8x128xf32>
    %240 = vector.extract_strided_slice %239 {offsets = [0, 0], sizes = [8, 32], strides = [1, 1]} : vector<8x128xf32> to vector<8x32xf32>
    %241 = vector.extract_strided_slice %239 {offsets = [0, 32], sizes = [8, 32], strides = [1, 1]} : vector<8x128xf32> to vector<8x32xf32>
    %242 = vector.extract_strided_slice %239 {offsets = [0, 64], sizes = [8, 32], strides = [1, 1]} : vector<8x128xf32> to vector<8x32xf32>
    %243 = vector.extract_strided_slice %239 {offsets = [0, 96], sizes = [8, 32], strides = [1, 1]} : vector<8x128xf32> to vector<8x32xf32>
    %244 = arith.mulf %241, %227 : vector<8x32xf32>
    %245 = arith.mulf %240, %242 : vector<8x32xf32>
    %246 = arith.addf %244, %245 : vector<8x32xf32>
    %247 = math.tanh %246 : vector<8x32xf32>
    %248 = arith.mulf %243, %247 : vector<8x32xf32>
    %c24_81 = arith.constant 24 : index
    %c0_82 = arith.constant 0 : index
    %249 = vector.load %arg10[%c24_81, %c0_82] : memref<64x128xf32, #tpu.memory_space<vmem>>, vector<8x128xf32>
    %cst_83 = arith.constant dense<0.000000e+00> : vector<8x128xf32>
    %250 = tpu.matmul %248, %184, %cst_83 {dimension_numbers = #tpu.dot_dimension_numbers<[1], [0], [0], [1], [0, 0, 1, 1], [], []>} : vector<8x32xf32>, vector<32x128xf32>, vector<8x128xf32> -> vector<8x128xf32>
    %251 = arith.addf %249, %250 : vector<8x128xf32>
    %cst_84 = arith.constant 5.000000e-01 : f32
    %252 = vector.broadcast %cst_84 : f32 to vector<8x128xf32>
    %253 = arith.mulf %252, %251 : vector<8x128xf32>
    %254 = math.tanh %253 : vector<8x128xf32>
    %255 = vector.broadcast %8 : vector<1x128xf32> to vector<8x128xf32>
    %256 = arith.mulf %254, %255 : vector<8x128xf32>
    %257 = vector.broadcast %11 : vector<1x128xf32> to vector<8x128xf32>
    %258 = arith.addf %256, %257 : vector<8x128xf32>
    %259 = vector.extract_strided_slice %258 {offsets = [0, 0], sizes = [8, 32], strides = [1, 1]} : vector<8x128xf32> to vector<8x32xf32>
    %260 = vector.extract_strided_slice %258 {offsets = [0, 32], sizes = [8, 32], strides = [1, 1]} : vector<8x128xf32> to vector<8x32xf32>
    %261 = vector.extract_strided_slice %258 {offsets = [0, 64], sizes = [8, 32], strides = [1, 1]} : vector<8x128xf32> to vector<8x32xf32>
    %262 = vector.extract_strided_slice %258 {offsets = [0, 96], sizes = [8, 32], strides = [1, 1]} : vector<8x128xf32> to vector<8x32xf32>
    %263 = arith.mulf %260, %246 : vector<8x32xf32>
    %264 = arith.mulf %259, %261 : vector<8x32xf32>
    %265 = arith.addf %263, %264 : vector<8x32xf32>
    %266 = math.tanh %265 : vector<8x32xf32>
    %267 = arith.mulf %262, %266 : vector<8x32xf32>
    %c32_85 = arith.constant 32 : index
    %c0_86 = arith.constant 0 : index
    %268 = vector.load %arg10[%c32_85, %c0_86] : memref<64x128xf32, #tpu.memory_space<vmem>>, vector<8x128xf32>
    %cst_87 = arith.constant dense<0.000000e+00> : vector<8x128xf32>
    %269 = tpu.matmul %267, %184, %cst_87 {dimension_numbers = #tpu.dot_dimension_numbers<[1], [0], [0], [1], [0, 0, 1, 1], [], []>} : vector<8x32xf32>, vector<32x128xf32>, vector<8x128xf32> -> vector<8x128xf32>
    %270 = arith.addf %268, %269 : vector<8x128xf32>
    %cst_88 = arith.constant 5.000000e-01 : f32
    %271 = vector.broadcast %cst_88 : f32 to vector<8x128xf32>
    %272 = arith.mulf %271, %270 : vector<8x128xf32>
    %273 = math.tanh %272 : vector<8x128xf32>
    %274 = vector.broadcast %8 : vector<1x128xf32> to vector<8x128xf32>
    %275 = arith.mulf %273, %274 : vector<8x128xf32>
    %276 = vector.broadcast %11 : vector<1x128xf32> to vector<8x128xf32>
    %277 = arith.addf %275, %276 : vector<8x128xf32>
    %278 = vector.extract_strided_slice %277 {offsets = [0, 0], sizes = [8, 32], strides = [1, 1]} : vector<8x128xf32> to vector<8x32xf32>
    %279 = vector.extract_strided_slice %277 {offsets = [0, 32], sizes = [8, 32], strides = [1, 1]} : vector<8x128xf32> to vector<8x32xf32>
    %280 = vector.extract_strided_slice %277 {offsets = [0, 64], sizes = [8, 32], strides = [1, 1]} : vector<8x128xf32> to vector<8x32xf32>
    %281 = vector.extract_strided_slice %277 {offsets = [0, 96], sizes = [8, 32], strides = [1, 1]} : vector<8x128xf32> to vector<8x32xf32>
    %282 = arith.mulf %279, %265 : vector<8x32xf32>
    %283 = arith.mulf %278, %280 : vector<8x32xf32>
    %284 = arith.addf %282, %283 : vector<8x32xf32>
    %285 = math.tanh %284 : vector<8x32xf32>
    %286 = arith.mulf %281, %285 : vector<8x32xf32>
    %c40_89 = arith.constant 40 : index
    %c0_90 = arith.constant 0 : index
    %287 = vector.load %arg10[%c40_89, %c0_90] : memref<64x128xf32, #tpu.memory_space<vmem>>, vector<8x128xf32>
    %cst_91 = arith.constant dense<0.000000e+00> : vector<8x128xf32>
    %288 = tpu.matmul %286, %184, %cst_91 {dimension_numbers = #tpu.dot_dimension_numbers<[1], [0], [0], [1], [0, 0, 1, 1], [], []>} : vector<8x32xf32>, vector<32x128xf32>, vector<8x128xf32> -> vector<8x128xf32>
    %289 = arith.addf %287, %288 : vector<8x128xf32>
    %cst_92 = arith.constant 5.000000e-01 : f32
    %290 = vector.broadcast %cst_92 : f32 to vector<8x128xf32>
    %291 = arith.mulf %290, %289 : vector<8x128xf32>
    %292 = math.tanh %291 : vector<8x128xf32>
    %293 = vector.broadcast %8 : vector<1x128xf32> to vector<8x128xf32>
    %294 = arith.mulf %292, %293 : vector<8x128xf32>
    %295 = vector.broadcast %11 : vector<1x128xf32> to vector<8x128xf32>
    %296 = arith.addf %294, %295 : vector<8x128xf32>
    %297 = vector.extract_strided_slice %296 {offsets = [0, 0], sizes = [8, 32], strides = [1, 1]} : vector<8x128xf32> to vector<8x32xf32>
    %298 = vector.extract_strided_slice %296 {offsets = [0, 32], sizes = [8, 32], strides = [1, 1]} : vector<8x128xf32> to vector<8x32xf32>
    %299 = vector.extract_strided_slice %296 {offsets = [0, 64], sizes = [8, 32], strides = [1, 1]} : vector<8x128xf32> to vector<8x32xf32>
    %300 = vector.extract_strided_slice %296 {offsets = [0, 96], sizes = [8, 32], strides = [1, 1]} : vector<8x128xf32> to vector<8x32xf32>
    %301 = arith.mulf %298, %284 : vector<8x32xf32>
    %302 = arith.mulf %297, %299 : vector<8x32xf32>
    %303 = arith.addf %301, %302 : vector<8x32xf32>
    %304 = math.tanh %303 : vector<8x32xf32>
    %305 = arith.mulf %300, %304 : vector<8x32xf32>
    %c48_93 = arith.constant 48 : index
    %c0_94 = arith.constant 0 : index
    %306 = vector.load %arg10[%c48_93, %c0_94] : memref<64x128xf32, #tpu.memory_space<vmem>>, vector<8x128xf32>
    %cst_95 = arith.constant dense<0.000000e+00> : vector<8x128xf32>
    %307 = tpu.matmul %305, %184, %cst_95 {dimension_numbers = #tpu.dot_dimension_numbers<[1], [0], [0], [1], [0, 0, 1, 1], [], []>} : vector<8x32xf32>, vector<32x128xf32>, vector<8x128xf32> -> vector<8x128xf32>
    %308 = arith.addf %306, %307 : vector<8x128xf32>
    %cst_96 = arith.constant 5.000000e-01 : f32
    %309 = vector.broadcast %cst_96 : f32 to vector<8x128xf32>
    %310 = arith.mulf %309, %308 : vector<8x128xf32>
    %311 = math.tanh %310 : vector<8x128xf32>
    %312 = vector.broadcast %8 : vector<1x128xf32> to vector<8x128xf32>
    %313 = arith.mulf %311, %312 : vector<8x128xf32>
    %314 = vector.broadcast %11 : vector<1x128xf32> to vector<8x128xf32>
    %315 = arith.addf %313, %314 : vector<8x128xf32>
    %316 = vector.extract_strided_slice %315 {offsets = [0, 0], sizes = [8, 32], strides = [1, 1]} : vector<8x128xf32> to vector<8x32xf32>
    %317 = vector.extract_strided_slice %315 {offsets = [0, 32], sizes = [8, 32], strides = [1, 1]} : vector<8x128xf32> to vector<8x32xf32>
    %318 = vector.extract_strided_slice %315 {offsets = [0, 64], sizes = [8, 32], strides = [1, 1]} : vector<8x128xf32> to vector<8x32xf32>
    %319 = vector.extract_strided_slice %315 {offsets = [0, 96], sizes = [8, 32], strides = [1, 1]} : vector<8x128xf32> to vector<8x32xf32>
    %320 = arith.mulf %317, %303 : vector<8x32xf32>
    %321 = arith.mulf %316, %318 : vector<8x32xf32>
    %322 = arith.addf %320, %321 : vector<8x32xf32>
    %323 = math.tanh %322 : vector<8x32xf32>
    %324 = arith.mulf %319, %323 : vector<8x32xf32>
    %c56_97 = arith.constant 56 : index
    %c0_98 = arith.constant 0 : index
    %325 = vector.load %arg10[%c56_97, %c0_98] : memref<64x128xf32, #tpu.memory_space<vmem>>, vector<8x128xf32>
    %cst_99 = arith.constant dense<0.000000e+00> : vector<8x128xf32>
    %326 = tpu.matmul %324, %184, %cst_99 {dimension_numbers = #tpu.dot_dimension_numbers<[1], [0], [0], [1], [0, 0, 1, 1], [], []>} : vector<8x32xf32>, vector<32x128xf32>, vector<8x128xf32> -> vector<8x128xf32>
    %327 = arith.addf %325, %326 : vector<8x128xf32>
    %cst_100 = arith.constant 5.000000e-01 : f32
    %328 = vector.broadcast %cst_100 : f32 to vector<8x128xf32>
    %329 = arith.mulf %328, %327 : vector<8x128xf32>
    %330 = math.tanh %329 : vector<8x128xf32>
    %331 = vector.broadcast %8 : vector<1x128xf32> to vector<8x128xf32>
    %332 = arith.mulf %330, %331 : vector<8x128xf32>
    %333 = vector.broadcast %11 : vector<1x128xf32> to vector<8x128xf32>
    %334 = arith.addf %332, %333 : vector<8x128xf32>
    %335 = vector.extract_strided_slice %334 {offsets = [0, 0], sizes = [8, 32], strides = [1, 1]} : vector<8x128xf32> to vector<8x32xf32>
    %336 = vector.extract_strided_slice %334 {offsets = [0, 32], sizes = [8, 32], strides = [1, 1]} : vector<8x128xf32> to vector<8x32xf32>
    %337 = vector.extract_strided_slice %334 {offsets = [0, 64], sizes = [8, 32], strides = [1, 1]} : vector<8x128xf32> to vector<8x32xf32>
    %338 = vector.extract_strided_slice %334 {offsets = [0, 96], sizes = [8, 32], strides = [1, 1]} : vector<8x128xf32> to vector<8x32xf32>
    %339 = arith.mulf %336, %322 : vector<8x32xf32>
    %340 = arith.mulf %335, %337 : vector<8x32xf32>
    %341 = arith.addf %339, %340 : vector<8x32xf32>
    %342 = math.tanh %341 : vector<8x32xf32>
    %343 = arith.mulf %338, %342 : vector<8x32xf32>
    %c0_101 = arith.constant 0 : index
    %c0_102 = arith.constant 0 : index
    %344 = vector.load %arg7[%c0_101, %c0_102] : memref<32x4xf32, #tpu.memory_space<vmem>>, vector<32x4xf32>
    %cst_103 = arith.constant dense<0.000000e+00> : vector<8x4xf32>
    %345 = tpu.matmul %343, %344, %cst_103 {dimension_numbers = #tpu.dot_dimension_numbers<[1], [0], [0], [1], [0, 0, 1, 1], [], []>} : vector<8x32xf32>, vector<32x4xf32>, vector<8x4xf32> -> vector<8x4xf32>
    %c0_104 = arith.constant 0 : index
    %c0_105 = arith.constant 0 : index
    %346 = vector.load %arg8[%c0_104, %c0_105] : memref<1x4xf32, #tpu.memory_space<vmem>>, vector<1x4xf32>
    %347 = vector.broadcast %346 : vector<1x4xf32> to vector<8x4xf32>
    %348 = arith.addf %345, %347 : vector<8x4xf32>
    %c0_106 = arith.constant 0 : index
    %c0_107 = arith.constant 0 : index
    %349 = vector.load %arg9[%c0_106, %c0_107] : memref<8x4xf32, #tpu.memory_space<vmem>>, vector<8x4xf32>
    tpu.vector_store %arg9[%c0_106, %c0_107], %348 {strides = array<i32>} : memref<8x4xf32, #tpu.memory_space<vmem>>, vector<8x4xf32>,
    return
  }
}

</mosaic_0001>

<llo_original>
// kernel: tpu_custom_call.1
$region0: #{tpu_custom_call.1}
  #allocation0 [shape = 'u32[]', space=smem, size = 0x4, offset = 0x4, fixed_abs, tag = 'smem constant byte address 0x4 - core index']
  #allocation1 [shape = 'u32[144,128]{1,0:T(1,128)}', space=vmem, size = 0x12000, scoped, tag = 'internal scratch']
  #allocation2 [shape = 'f32[64,128]{1,0:T(8,128)}', space=vmem, size = 0x8000, scoped, tag = 'scratch operand']
  #allocation3 [shape = 'f32[64,32]{1,0:T(8,128)}', space=vmem, size = 0x8000, scoped, tag = 'scratch operand']
  %s0 = inlined_call_operand.vmem [shape: f32[64,16], index: 0, kind: input, shape index: {}]
  %s1 = inlined_call_operand.vmem [shape: f32[16,128], index: 1, kind: input, shape index: {}]
  %s2 = inlined_call_operand.vmem [shape: f32[32,128], index: 2, kind: input, shape index: {}]
  %s3 = inlined_call_operand.vmem [shape: f32[1,128], index: 3, kind: input, shape index: {}]
  %s4 = inlined_call_operand.vmem [shape: f32[32,128], index: 4, kind: input, shape index: {}]
  %s5 = inlined_call_operand.vmem [shape: f32[32,128], index: 5, kind: input, shape index: {}]
  %s6 = inlined_call_operand.vmem [shape: f32[1,128], index: 6, kind: input, shape index: {}]
  %s7 = inlined_call_operand.vmem [shape: f32[32,4], index: 7, kind: input, shape index: {}]
  %s8 = inlined_call_operand.vmem [shape: f32[1,4], index: 8, kind: input, shape index: {}]
  %s9 = inlined_call_operand.vmem [shape: f32[8,4], index: 9, kind: output, shape index: {}]
  %s10 = sld [smem:[#allocation0]]
  $region46: #{tpu_custom_call.1} parent=0
    _
  %s12 = ssub.s32 1, %s10
  %s13 = scalar_select 0, %s12, %s10
  // Predicated region
  $region2: #{tpu_custom_call.1} parent=0 // pred_check
    _
  $region3: #{tpu_custom_call.1} parent=0 // pred_check_branch
    %15 = sbr.rel (0) target = $region5
  $region4: #{tpu_custom_call.1} parent=0 // pred_region
    _
  $region5: #{tpu_custom_call.1} parent=0 // pred_fallthru
    _
  // Predicated region
  $region6: #{tpu_custom_call.1} parent=0 // pred_check
    _
  $region7: #{tpu_custom_call.1} parent=0 // pred_check_branch
    %17 = sbr.rel (0) target = $region9
  $region8: #{tpu_custom_call.1} parent=0 // pred_region
    _
  $region9: #{tpu_custom_call.1} parent=0 // pred_fallthru
    _
  // Predicated region
  $region10: #{tpu_custom_call.1} parent=0 // pred_check
    _
  $region11: #{tpu_custom_call.1} parent=0 // pred_check_branch
    %19 = sbr.rel (0) target = $region13
  $region12: #{tpu_custom_call.1} parent=0 // pred_region
    _
  $region13: #{tpu_custom_call.1} parent=0 // pred_fallthru
    _
  // Predicated region
  $region14: #{tpu_custom_call.1} parent=0 // pred_check
    _
  $region15: #{tpu_custom_call.1} parent=0 // pred_check_branch
    %21 = sbr.rel (0) target = $region17
  $region16: #{tpu_custom_call.1} parent=0 // pred_region
    _
  $region17: #{tpu_custom_call.1} parent=0 // pred_fallthru
    _
  // Predicated region
  $region18: #{tpu_custom_call.1} parent=0 // pred_check
    _
  $region19: #{tpu_custom_call.1} parent=0 // pred_check_branch
    %23 = sbr.rel (0) target = $region21
  $region20: #{tpu_custom_call.1} parent=0 // pred_region
    _
  $region21: #{tpu_custom_call.1} parent=0 // pred_fallthru
    _
  // Predicated region
  $region22: #{tpu_custom_call.1} parent=0 // pred_check
    _
  $region23: #{tpu_custom_call.1} parent=0 // pred_check_branch
    %25 = sbr.rel (0) target = $region25
  $region24: #{tpu_custom_call.1} parent=0 // pred_region
    _
  $region25: #{tpu_custom_call.1} parent=0 // pred_fallthru
    _
  // Predicated region
  $region26: #{tpu_custom_call.1} parent=0 // pred_check
    _
  $region27: #{tpu_custom_call.1} parent=0 // pred_check_branch
    %27 = sbr.rel (0) target = $region29
  $region28: #{tpu_custom_call.1} parent=0 // pred_region
    _
  $region29: #{tpu_custom_call.1} parent=0 // pred_fallthru
    _
  // Predicated region
  $region30: #{tpu_custom_call.1} parent=0 // pred_check
    _
  $region31: #{tpu_custom_call.1} parent=0 // pred_check_branch
    %29 = sbr.rel (0) target = $region33
  $region32: #{tpu_custom_call.1} parent=0 // pred_region
    _
  $region33: #{tpu_custom_call.1} parent=0 // pred_fallthru
    _
  // Predicated region
  $region34: #{tpu_custom_call.1} parent=0 // pred_check
    _
  $region35: #{tpu_custom_call.1} parent=0 // pred_check_branch
    %31 = sbr.rel (0) target = $region37
  $region36: #{tpu_custom_call.1} parent=0 // pred_region
    _
  $region37: #{tpu_custom_call.1} parent=0 // pred_fallthru
    _
  %v32 = vlaneseq
  %v33 = vand.u32 %v32, 127
  %vm34 = vcmp.ge.s32.totalorder %v33, 64
  %vm35 = vcmp.lt.s32.totalorder %v33, 96
  %vm36 = vmand %vm34, %vm35
  %v37 = vsel %vm36, 1.0, 0.5
  %v38 = vsel %vm36, 0.0, 0.5
  %v39 = vld [vmem:[%s0] sm:$0xff]
  %v40 = vld [vmem:[%s0 + $0x8] sm:$0xff]
  %v41 = vld [vmem:[%s0 + $0x10] sm:$0xff]
  %v42 = vld [vmem:[%s0 + $0x18] sm:$0xff]
  %v43 = vld [vmem:[%s0 + $0x20] sm:$0xff]
  %v44 = vld [vmem:[%s0 + $0x28] sm:$0xff]
  %v45 = vld [vmem:[%s0 + $0x30] sm:$0xff]
  %v46 = vld [vmem:[%s0 + $0x38] sm:$0xff]
  %v47 = vld [vmem:[%s1] sm:$0xff]
  %v48 = vld [vmem:[%s1 + $0x8] sm:$0xff]
  %v49 = vld [vmem:[%s2] sm:$0xff]
  %v50 = vld [vmem:[%s2 + $0x8] sm:$0xff]
  %v51 = vld [vmem:[%s2 + $0x10] sm:$0xff]
  %v52 = vld [vmem:[%s2 + $0x18] sm:$0xff]
  %v53 = vld [vmem:[%s3] sm:$0x1]
  %v55 = vlaneseq
  %v56 = vshrl.u32 %v55, 7
  %v57 = vsub.s32 0, %v56
  %v58 = vrot.slane %v53, %v57
  %vm60 = vcmask 130048
  %v62 = vsel %vm60, %v39, 0
  %v65 = vsel %vm60, %v40, 0
  %v68 = vsel %vm60, %v41, 0
  %v71 = vsel %vm60, %v42, 0
  %v74 = vsel %vm60, %v43, 0
  %v77 = vsel %vm60, %v44, 0
  %v80 = vsel %vm60, %v45, 0
  %v83 = vsel %vm60, %v46, 0
  %85 = vmatprep.subr.mxu0 0.0
  %86 = vmatpush1.msra.mxu0 %v47
  %87 = vmatprep.subr.mxu0 0.0
  %88 = vmatpush1.msra.mxu0 %v48
  %89 = vmatprep.subr.mxu0 0.0
  %90 = vmatpush1.msra.mxu0 0.0
  %91 = vmatprep.subr.mxu0 0.0
  %92 = vmatpush1.msra.mxu0 0.0
  %93 = vmatprep.subr.mxu0 0.0
  %94 = vmatpush1.msra.mxu0 0.0
  %95 = vmatprep.subr.mxu0 0.0
  %96 = vmatpush1.msra.mxu0 0.0
  %97 = vmatprep.subr.mxu0 0.0
  %98 = vmatpush1.msra.mxu0 0.0
  %99 = vmatprep.subr.mxu0 0.0
  %100 = vmatpush1.msra.mxu0 0.0
  %101 = vmatprep.subr.mxu0 0.0
  %102 = vmatpush1.msra.mxu0 0.0
  %103 = vmatprep.subr.mxu0 0.0
  %104 = vmatpush1.msra.mxu0 0.0
  %105 = vmatprep.subr.mxu0 0.0
  %106 = vmatpush1.msra.mxu0 0.0
  %107 = vmatprep.subr.mxu0 0.0
  %108 = vmatpush1.msra.mxu0 0.0
  %109 = vmatprep.subr.mxu0 0.0
  %110 = vmatpush1.msra.mxu0 0.0
  %111 = vmatprep.subr.mxu0 0.0
  %112 = vmatpush1.msra.mxu0 0.0
  %113 = vmatprep.subr.mxu0 0.0
  %114 = vmatpush1.msra.mxu0 0.0
  %115 = vmatprep.subr.mxu0 0.0
  %116 = vmatpush1.msra.mxu0 0.0
  %117 = vmatprep.subr.mxu0 0.0
  %118 = vmatpush1.msra.mxu0 0.0
  %119 = vmatprep.subr.mxu0 0.0
  %120 = vmatpush1.msra.mxu0 0.0
  %121 = vmatprep.subr.mxu0 0.0
  %122 = vmatpush1.msra.mxu0 0.0
  %123 = vmatprep.subr.mxu0 0.0
  %124 = vmatpush1.msra.mxu0 0.0
  %125 = vmatprep.subr.mxu0 0.0
  %126 = vmatpush1.msra.mxu0 0.0
  %127 = vmatprep.subr.mxu0 0.0
  %128 = vmatpush1.msra.mxu0 0.0
  %129 = vmatprep.subr.mxu0 0.0
  %130 = vmatpush1.msra.mxu0 0.0
  %131 = vmatprep.subr.mxu0 0.0
  %132 = vmatpush1.msra.mxu0 0.0
  %133 = vmatprep.subr.mxu0 0.0
  %134 = vmatpush1.msra.mxu0 0.0
  %135 = vmatprep.subr.mxu0 0.0
  %136 = vmatpush1.msra.mxu0 0.0
  %137 = vmatprep.subr.mxu0 0.0
  %138 = vmatpush1.msra.mxu0 0.0
  %139 = vmatprep.subr.mxu0 0.0
  %140 = vmatpush1.msra.mxu0 0.0
  %141 = vmatprep.subr.mxu0 0.0
  %142 = vmatpush1.msra.mxu0 0.0
  %143 = vmatprep.subr.mxu0 0.0
  %144 = vmatpush1.msra.mxu0 0.0
  %145 = vmatprep.subr.mxu0 0.0
  %146 = vmatpush1.msra.mxu0 0.0
  %147 = vmatprep.subr.mxu0 0.0
  %148 = vmatpush1.msra.mxu0 0.0
  %149 = vmatprep.mubr.f32.mxu0 0.0
  %150 = vmatmul.mubr.f32.gmra.mrb[0].mxu0 %v62
  %v151 = vpop.f32.mrb[0].mxu0
  %v152 = vadd.f32 %v58, %v151
  %v153 = vpop.f32.mrb[0].mxu0
  %154 = vmatprep.mubr.f32.mxu0 0.0
  %155 = vmatmul.mubr.f32.gmra.mrb[0].mxu0 %v65
  %v156 = vpop.f32.mrb[0].mxu0
  %v157 = vadd.f32 %v58, %v156
  %v158 = vpop.f32.mrb[0].mxu0
  %159 = vmatprep.mubr.f32.mxu0 0.0
  %160 = vmatmul.mubr.f32.gmra.mrb[0].mxu0 %v68
  %v161 = vpop.f32.mrb[0].mxu0
  %v162 = vadd.f32 %v58, %v161
  %v163 = vpop.f32.mrb[0].mxu0
  %164 = vmatprep.mubr.f32.mxu0 0.0
  %165 = vmatmul.mubr.f32.gmra.mrb[0].mxu0 %v71
  %v166 = vpop.f32.mrb[0].mxu0
  %v167 = vadd.f32 %v58, %v166
  %v168 = vpop.f32.mrb[0].mxu0
  %169 = vmatprep.mubr.f32.mxu0 0.0
  %170 = vmatmul.mubr.f32.gmra.mrb[0].mxu0 %v74
  %v171 = vpop.f32.mrb[0].mxu0
  %v172 = vadd.f32 %v58, %v171
  %v173 = vpop.f32.mrb[0].mxu0
  %174 = vmatprep.mubr.f32.mxu0 0.0
  %175 = vmatmul.mubr.f32.gmra.mrb[0].mxu0 %v77
  %v176 = vpop.f32.mrb[0].mxu0
  %v177 = vadd.f32 %v58, %v176
  %v178 = vpop.f32.mrb[0].mxu0
  %179 = vmatprep.mubr.f32.mxu0 0.0
  %180 = vmatmul.mubr.f32.gmra.mrb[0].mxu0 %v80
  %v181 = vpop.f32.mrb[0].mxu0
  %v182 = vadd.f32 %v58, %v181
  %v183 = vpop.f32.mrb[0].mxu0
  %184 = vmatprep.mubr.f32.mxu0 0.0
  %185 = vmatmul.mubr.f32.gmra.mrb[0].mxu0 %v83
  %v186 = vpop.f32.mrb[0].mxu0
  %v187 = vadd.f32 %v58, %v186
  %v188 = vpop.f32.mrb[0].mxu0
  %189 = vdwg.mxu0
  %190 = vst [vmem:[#allocation2] sm:$0xff] %v152
  %191 = vst [vmem:[#allocation2 + $0x8] sm:$0xff] %v157
  %192 = vst [vmem:[#allocation2 + $0x10] sm:$0xff] %v162
  %193 = vst [vmem:[#allocation2 + $0x18] sm:$0xff] %v167
  %194 = vst [vmem:[#allocation2 + $0x20] sm:$0xff] %v172
  %195 = vst [vmem:[#allocation2 + $0x28] sm:$0xff] %v177
  %196 = vst [vmem:[#allocation2 + $0x30] sm:$0xff] %v182
  %197 = vst [vmem:[#allocation2 + $0x38] sm:$0xff] %v187
  %v198 = vld [vmem:[#allocation2] sm:$0xff]
  %vm199 = vcmask 261120
  %v201 = vsel %vm199, 0.0, 0
  %203 = vmatprep.subr.mxu0 0.0
  %204 = vmatpush1.msra.mxu0 %v49
  %205 = vmatprep.subr.mxu0 0.0
  %206 = vmatpush1.msra.mxu0 %v50
  %207 = vmatprep.subr.mxu0 0.0
  %208 = vmatpush1.msra.mxu0 %v51
  %209 = vmatprep.subr.mxu0 0.0
  %210 = vmatpush1.msra.mxu0 %v52
  %211 = vmatprep.subr.mxu0 0.0
  %212 = vmatpush1.msra.mxu0 0.0
  %213 = vmatprep.subr.mxu0 0.0
  %214 = vmatpush1.msra.mxu0 0.0
  %215 = vmatprep.subr.mxu0 0.0
  %216 = vmatpush1.msra.mxu0 0.0
  %217 = vmatprep.subr.mxu0 0.0
  %218 = vmatpush1.msra.mxu0 0.0
  %219 = vmatprep.subr.mxu0 0.0
  %220 = vmatpush1.msra.mxu0 0.0
  %221 = vmatprep.subr.mxu0 0.0
  %222 = vmatpush1.msra.mxu0 0.0
  %223 = vmatprep.subr.mxu0 0.0
  %224 = vmatpush1.msra.mxu0 0.0
  %225 = vmatprep.subr.mxu0 0.0
  %226 = vmatpush1.msra.mxu0 0.0
  %227 = vmatprep.subr.mxu0 0.0
  %228 = vmatpush1.msra.mxu0 0.0
  %229 = vmatprep.subr.mxu0 0.0
  %230 = vmatpush1.msra.mxu0 0.0
  %231 = vmatprep.subr.mxu0 0.0
  %232 = vmatpush1.msra.mxu0 0.0
  %233 = vmatprep.subr.mxu0 0.0
  %234 = vmatpush1.msra.mxu0 0.0
  %235 = vmatprep.subr.mxu0 0.0
  %236 = vmatpush1.msra.mxu0 0.0
  %237 = vmatprep.subr.mxu0 0.0
  %238 = vmatpush1.msra.mxu0 0.0
  %239 = vmatprep.subr.mxu0 0.0
  %240 = vmatpush1.msra.mxu0 0.0
  %241 = vmatprep.subr.mxu0 0.0
  %242 = vmatpush1.msra.mxu0 0.0
  %243 = vmatprep.subr.mxu0 0.0
  %244 = vmatpush1.msra.mxu0 0.0
  %245 = vmatprep.subr.mxu0 0.0
  %246 = vmatpush1.msra.mxu0 0.0
  %247 = vmatprep.subr.mxu0 0.0
  %248 = vmatpush1.msra.mxu0 0.0
  %249 = vmatprep.subr.mxu0 0.0
  %250 = vmatpush1.msra.mxu0 0.0
  %251 = vmatprep.subr.mxu0 0.0
  %252 = vmatpush1.msra.mxu0 0.0
  %253 = vmatprep.subr.mxu0 0.0
  %254 = vmatpush1.msra.mxu0 0.0
  %255 = vmatprep.subr.mxu0 0.0
  %256 = vmatpush1.msra.mxu0 0.0
  %257 = vmatprep.subr.mxu0 0.0
  %258 = vmatpush1.msra.mxu0 0.0
  %259 = vmatprep.subr.mxu0 0.0
  %260 = vmatpush1.msra.mxu0 0.0
  %261 = vmatprep.subr.mxu0 0.0
  %262 = vmatpush1.msra.mxu0 0.0
  %263 = vmatprep.subr.mxu0 0.0
  %264 = vmatpush1.msra.mxu0 0.0
  %265 = vmatprep.subr.mxu0 0.0
  %266 = vmatpush1.msra.mxu0 0.0
  %267 = vmatprep.mubr.f32.mxu0 0.0
  %268 = vmatmul.mubr.f32.gmra.mrb[0].mxu0 %v201
  %v269 = vpop.f32.mrb[0].mxu0
  %v270 = vadd.f32 0.0, %v269
  %v271 = vpop.f32.mrb[0].mxu0
  %272 = vdwg.mxu0
  %v273 = vadd.f32 %v198, %v270
  %v274 = vmul.f32 %v273, 0.5
  %v275 = vtanh.pop %v274
  %v276 = vmul.f32 %v275, %v37
  %v277 = vadd.f32 %v276, %v38
  %v278 = vmul.f32 %v277, 0.0
  %280 = vrot.lane.b32.xlu0 %v277, 64
  %v281 = vpop.permute.xlu0 %280
  %v283 = vmul.f32 %v277, %v281
  %285 = vrot.lane.b32.xlu0 %v283, 32
  %v286 = vpop.permute.xlu0 %285
  %v288 = vadd.f32 %v278, %v286
  %v289 = vtanh.pop %v288
  %291 = vrot.lane.b32.xlu0 %v289, 64
  %v292 = vpop.permute.xlu0 %291
  %v294 = vmul.f32 %v277, %v292
  %296 = vrot.lane.b32.xlu0 %v294, 32
  %v297 = vpop.permute.xlu0 %296
  %299 = vst.msk [vmem:[#allocation3] sm:$0xff] %vm199, %v297
  %v300 = vld [vmem:[#allocation2 + $0x8] sm:$0xff]
  %v301 = vsel %vm199, %v297, 0
  %303 = vmatprep.subr.mxu0 0.0
  %304 = vmatpush1.msra.mxu0 %v49
  %305 = vmatprep.subr.mxu0 0.0
  %306 = vmatpush1.msra.mxu0 %v50
  %307 = vmatprep.subr.mxu0 0.0
  %308 = vmatpush1.msra.mxu0 %v51
  %309 = vmatprep.subr.mxu0 0.0
  %310 = vmatpush1.msra.mxu0 %v52
  %311 = vmatprep.subr.mxu0 0.0
  %312 = vmatpush1.msra.mxu0 0.0
  %313 = vmatprep.subr.mxu0 0.0
  %314 = vmatpush1.msra.mxu0 0.0
  %315 = vmatprep.subr.mxu0 0.0
  %316 = vmatpush1.msra.mxu0 0.0
  %317 = vmatprep.subr.mxu0 0.0
  %318 = vmatpush1.msra.mxu0 0.0
  %319 = vmatprep.subr.mxu0 0.0
  %320 = vmatpush1.msra.mxu0 0.0
  %321 = vmatprep.subr.mxu0 0.0
  %322 = vmatpush1.msra.mxu0 0.0
  %323 = vmatprep.subr.mxu0 0.0
  %324 = vmatpush1.msra.mxu0 0.0
  %325 = vmatprep.subr.mxu0 0.0
  %326 = vmatpush1.msra.mxu0 0.0
  %327 = vmatprep.subr.mxu0 0.0
  %328 = vmatpush1.msra.mxu0 0.0
  %329 = vmatprep.subr.mxu0 0.0
  %330 = vmatpush1.msra.mxu0 0.0
  %331 = vmatprep.subr.mxu0 0.0
  %332 = vmatpush1.msra.mxu0 0.0
  %333 = vmatprep.subr.mxu0 0.0
  %334 = vmatpush1.msra.mxu0 0.0
  %335 = vmatprep.subr.mxu0 0.0
  %336 = vmatpush1.msra.mxu0 0.0
  %337 = vmatprep.subr.mxu0 0.0
  %338 = vmatpush1.msra.mxu0 0.0
  %339 = vmatprep.subr.mxu0 0.0
  %340 = vmatpush1.msra.mxu0 0.0
  %341 = vmatprep.subr.mxu0 0.0
  %342 = vmatpush1.msra.mxu0 0.0
  %343 = vmatprep.subr.mxu0 0.0
  %344 = vmatpush1.msra.mxu0 0.0
  %345 = vmatprep.subr.mxu0 0.0
  %346 = vmatpush1.msra.mxu0 0.0
  %347 = vmatprep.subr.mxu0 0.0
  %348 = vmatpush1.msra.mxu0 0.0
  %349 = vmatprep.subr.mxu0 0.0
  %350 = vmatpush1.msra.mxu0 0.0
  %351 = vmatprep.subr.mxu0 0.0
  %352 = vmatpush1.msra.mxu0 0.0
  %353 = vmatprep.subr.mxu0 0.0
  %354 = vmatpush1.msra.mxu0 0.0
  %355 = vmatprep.subr.mxu0 0.0
  %356 = vmatpush1.msra.mxu0 0.0
  %357 = vmatprep.subr.mxu0 0.0
  %358 = vmatpush1.msra.mxu0 0.0
  %359 = vmatprep.subr.mxu0 0.0
  %360 = vmatpush1.msra.mxu0 0.0
  %361 = vmatprep.subr.mxu0 0.0
  %362 = vmatpush1.msra.mxu0 0.0
  %363 = vmatprep.subr.mxu0 0.0
  %364 = vmatpush1.msra.mxu0 0.0
  %365 = vmatprep.subr.mxu0 0.0
  %366 = vmatpush1.msra.mxu0 0.0
  %367 = vmatprep.mubr.f32.mxu0 0.0
  %368 = vmatmul.mubr.f32.gmra.mrb[0].mxu0 %v301
  %v369 = vpop.f32.mrb[0].mxu0
  %v370 = vadd.f32 0.0, %v369
  %v371 = vpop.f32.mrb[0].mxu0
  %372 = vdwg.mxu0
  %v373 = vadd.f32 %v300, %v370
  %v374 = vmul.f32 %v373, 0.5
  %v375 = vtanh.pop %v374
  %v376 = vmul.f32 %v375, %v37
  %v377 = vadd.f32 %v376, %v38
  %v378 = vmul.f32 %v377, %v288
  %380 = vrot.lane.b32.xlu0 %v377, 64
  %v381 = vpop.permute.xlu0 %380
  %v383 = vmul.f32 %v377, %v381
  %385 = vrot.lane.b32.xlu0 %v383, 32
  %v386 = vpop.permute.xlu0 %385
  %v388 = vadd.f32 %v378, %v386
  %v389 = vtanh.pop %v388
  %391 = vrot.lane.b32.xlu0 %v389, 64
  %v392 = vpop.permute.xlu0 %391
  %v394 = vmul.f32 %v377, %v392
  %396 = vrot.lane.b32.xlu0 %v394, 32
  %v397 = vpop.permute.xlu0 %396
  %399 = vst.msk [vmem:[#allocation3 + $0x8] sm:$0xff] %vm199, %v397
  %v400 = vld [vmem:[#allocation2 + $0x10] sm:$0xff]
  %v401 = vsel %vm199, %v397, 0
  %403 = vmatprep.subr.mxu0 0.0
  %404 = vmatpush1.msra.mxu0 %v49
  %405 = vmatprep.subr.mxu0 0.0
  %406 = vmatpush1.msra.mxu0 %v50
  %407 = vmatprep.subr.mxu0 0.0
  %408 = vmatpush1.msra.mxu0 %v51
  %409 = vmatprep.subr.mxu0 0.0
  %410 = vmatpush1.msra.mxu0 %v52
  %411 = vmatprep.subr.mxu0 0.0
  %412 = vmatpush1.msra.mxu0 0.0
  %413 = vmatprep.subr.mxu0 0.0
  %414 = vmatpush1.msra.mxu0 0.0
  %415 = vmatprep.subr.mxu0 0.0
  %416 = vmatpush1.msra.mxu0 0.0
  %417 = vmatprep.subr.mxu0 0.0
  %418 = vmatpush1.msra.mxu0 0.0
  %419 = vmatprep.subr.mxu0 0.0
  %420 = vmatpush1.msra.mxu0 0.0
  %421 = vmatprep.subr.mxu0 0.0
  %422 = vmatpush1.msra.mxu0 0.0
  %423 = vmatprep.subr.mxu0 0.0
  %424 = vmatpush1.msra.mxu0 0.0
  %425 = vmatprep.subr.mxu0 0.0
  %426 = vmatpush1.msra.mxu0 0.0
  %427 = vmatprep.subr.mxu0 0.0
  %428 = vmatpush1.msra.mxu0 0.0
  %429 = vmatprep.subr.mxu0 0.0
  %430 = vmatpush1.msra.mxu0 0.0
  %431 = vmatprep.subr.mxu0 0.0
  %432 = vmatpush1.msra.mxu0 0.0
  %433 = vmatprep.subr.mxu0 0.0
  %434 = vmatpush1.msra.mxu0 0.0
  %435 = vmatprep.subr.mxu0 0.0
  %436 = vmatpush1.msra.mxu0 0.0
  %437 = vmatprep.subr.mxu0 0.0
  %438 = vmatpush1.msra.mxu0 0.0
  %439 = vmatprep.subr.mxu0 0.0
  %440 = vmatpush1.msra.mxu0 0.0
  %441 = vmatprep.subr.mxu0 0.0
  %442 = vmatpush1.msra.mxu0 0.0
  %443 = vmatprep.subr.mxu0 0.0
  %444 = vmatpush1.msra.mxu0 0.0
  %445 = vmatprep.subr.mxu0 0.0
  %446 = vmatpush1.msra.mxu0 0.0
  %447 = vmatprep.subr.mxu0 0.0
  %448 = vmatpush1.msra.mxu0 0.0
  %449 = vmatprep.subr.mxu0 0.0
  %450 = vmatpush1.msra.mxu0 0.0
  %451 = vmatprep.subr.mxu0 0.0
  %452 = vmatpush1.msra.mxu0 0.0
  %453 = vmatprep.subr.mxu0 0.0
  %454 = vmatpush1.msra.mxu0 0.0
  %455 = vmatprep.subr.mxu0 0.0
  %456 = vmatpush1.msra.mxu0 0.0
  %457 = vmatprep.subr.mxu0 0.0
  %458 = vmatpush1.msra.mxu0 0.0
  %459 = vmatprep.subr.mxu0 0.0
  %460 = vmatpush1.msra.mxu0 0.0
  %461 = vmatprep.subr.mxu0 0.0
  %462 = vmatpush1.msra.mxu0 0.0
  %463 = vmatprep.subr.mxu0 0.0
  %464 = vmatpush1.msra.mxu0 0.0
  %465 = vmatprep.subr.mxu0 0.0
  %466 = vmatpush1.msra.mxu0 0.0
  %467 = vmatprep.mubr.f32.mxu0 0.0
  %468 = vmatmul.mubr.f32.gmra.mrb[0].mxu0 %v401
  %v469 = vpop.f32.mrb[0].mxu0
  %v470 = vadd.f32 0.0, %v469
  %v471 = vpop.f32.mrb[0].mxu0
  %472 = vdwg.mxu0
  %v473 = vadd.f32 %v400, %v470
  %v474 = vmul.f32 %v473, 0.5
  %v475 = vtanh.pop %v474
  %v476 = vmul.f32 %v475, %v37
  %v477 = vadd.f32 %v476, %v38
  %v478 = vmul.f32 %v477, %v388
  %480 = vrot.lane.b32.xlu0 %v477, 64
  %v481 = vpop.permute.xlu0 %480
  %v483 = vmul.f32 %v477, %v481
  %485 = vrot.lane.b32.xlu0 %v483, 32
  %v486 = vpop.permute.xlu0 %485
  %v488 = vadd.f32 %v478, %v486
  %v489 = vtanh.pop %v488
  %491 = vrot.lane.b32.xlu0 %v489, 64
  %v492 = vpop.permute.xlu0 %491
  %v494 = vmul.f32 %v477, %v492
  %496 = vrot.lane.b32.xlu0 %v494, 32
  %v497 = vpop.permute.xlu0 %496
  %499 = vst.msk [vmem:[#allocation3 + $0x10] sm:$0xff] %vm199, %v497
  %v500 = vld [vmem:[#allocation2 + $0x18] sm:$0xff]
  %v501 = vsel %vm199, %v497, 0
  %503 = vmatprep.subr.mxu0 0.0
  %504 = vmatpush1.msra.mxu0 %v49
  %505 = vmatprep.subr.mxu0 0.0
  %506 = vmatpush1.msra.mxu0 %v50
  %507 = vmatprep.subr.mxu0 0.0
  %508 = vmatpush1.msra.mxu0 %v51
  %509 = vmatprep.subr.mxu0 0.0
  %510 = vmatpush1.msra.mxu0 %v52
  %511 = vmatprep.subr.mxu0 0.0
  %512 = vmatpush1.msra.mxu0 0.0
  %513 = vmatprep.subr.mxu0 0.0
  %514 = vmatpush1.msra.mxu0 0.0
  %515 = vmatprep.subr.mxu0 0.0
  %516 = vmatpush1.msra.mxu0 0.0
  %517 = vmatprep.subr.mxu0 0.0
  %518 = vmatpush1.msra.mxu0 0.0
  %519 = vmatprep.subr.mxu0 0.0
  %520 = vmatpush1.msra.mxu0 0.0
  %521 = vmatprep.subr.mxu0 0.0
  %522 = vmatpush1.msra.mxu0 0.0
  %523 = vmatprep.subr.mxu0 0.0
  %524 = vmatpush1.msra.mxu0 0.0
  %525 = vmatprep.subr.mxu0 0.0
  %526 = vmatpush1.msra.mxu0 0.0
  %527 = vmatprep.subr.mxu0 0.0
  %528 = vmatpush1.msra.mxu0 0.0
  %529 = vmatprep.subr.mxu0 0.0
  %530 = vmatpush1.msra.mxu0 0.0
  %531 = vmatprep.subr.mxu0 0.0
  %532 = vmatpush1.msra.mxu0 0.0
  %533 = vmatprep.subr.mxu0 0.0
  %534 = vmatpush1.msra.mxu0 0.0
  %535 = vmatprep.subr.mxu0 0.0
  %536 = vmatpush1.msra.mxu0 0.0
  %537 = vmatprep.subr.mxu0 0.0
  %538 = vmatpush1.msra.mxu0 0.0
  %539 = vmatprep.subr.mxu0 0.0
  %540 = vmatpush1.msra.mxu0 0.0
  %541 = vmatprep.subr.mxu0 0.0
  %542 = vmatpush1.msra.mxu0 0.0
  %543 = vmatprep.subr.mxu0 0.0
  %544 = vmatpush1.msra.mxu0 0.0
  %545 = vmatprep.subr.mxu0 0.0
  %546 = vmatpush1.msra.mxu0 0.0
  %547 = vmatprep.subr.mxu0 0.0
  %548 = vmatpush1.msra.mxu0 0.0
  %549 = vmatprep.subr.mxu0 0.0
  %550 = vmatpush1.msra.mxu0 0.0
  %551 = vmatprep.subr.mxu0 0.0
  %552 = vmatpush1.msra.mxu0 0.0
  %553 = vmatprep.subr.mxu0 0.0
  %554 = vmatpush1.msra.mxu0 0.0
  %555 = vmatprep.subr.mxu0 0.0
  %556 = vmatpush1.msra.mxu0 0.0
  %557 = vmatprep.subr.mxu0 0.0
  %558 = vmatpush1.msra.mxu0 0.0
  %559 = vmatprep.subr.mxu0 0.0
  %560 = vmatpush1.msra.mxu0 0.0
  %561 = vmatprep.subr.mxu0 0.0
  %562 = vmatpush1.msra.mxu0 0.0
  %563 = vmatprep.subr.mxu0 0.0
  %564 = vmatpush1.msra.mxu0 0.0
  %565 = vmatprep.subr.mxu0 0.0
  %566 = vmatpush1.msra.mxu0 0.0
  %567 = vmatprep.mubr.f32.mxu0 0.0
  %568 = vmatmul.mubr.f32.gmra.mrb[0].mxu0 %v501
  %v569 = vpop.f32.mrb[0].mxu0
  %v570 = vadd.f32 0.0, %v569
  %v571 = vpop.f32.mrb[0].mxu0
  %572 = vdwg.mxu0
  %v573 = vadd.f32 %v500, %v570
  %v574 = vmul.f32 %v573, 0.5
  %v575 = vtanh.pop %v574
  %v576 = vmul.f32 %v575, %v37
  %v577 = vadd.f32 %v576, %v38
  %v578 = vmul.f32 %v577, %v488
  %580 = vrot.lane.b32.xlu0 %v577, 64
  %v581 = vpop.permute.xlu0 %580
  %v583 = vmul.f32 %v577, %v581
  %585 = vrot.lane.b32.xlu0 %v583, 32
  %v586 = vpop.permute.xlu0 %585
  %v588 = vadd.f32 %v578, %v586
  %v589 = vtanh.pop %v588
  %591 = vrot.lane.b32.xlu0 %v589, 64
  %v592 = vpop.permute.xlu0 %591
  %v594 = vmul.f32 %v577, %v592
  %596 = vrot.lane.b32.xlu0 %v594, 32
  %v597 = vpop.permute.xlu0 %596
  %599 = vst.msk [vmem:[#allocation3 + $0x18] sm:$0xff] %vm199, %v597
  %v600 = vld [vmem:[#allocation2 + $0x20] sm:$0xff]
  %v601 = vsel %vm199, %v597, 0
  %603 = vmatprep.subr.mxu0 0.0
  %604 = vmatpush1.msra.mxu0 %v49
  %605 = vmatprep.subr.mxu0 0.0
  %606 = vmatpush1.msra.mxu0 %v50
  %607 = vmatprep.subr.mxu0 0.0
  %608 = vmatpush1.msra.mxu0 %v51
  %609 = vmatprep.subr.mxu0 0.0
  %610 = vmatpush1.msra.mxu0 %v52
  %611 = vmatprep.subr.mxu0 0.0
  %612 = vmatpush1.msra.mxu0 0.0
  %613 = vmatprep.subr.mxu0 0.0
  %614 = vmatpush1.msra.mxu0 0.0
  %615 = vmatprep.subr.mxu0 0.0
  %616 = vmatpush1.msra.mxu0 0.0
  %617 = vmatprep.subr.mxu0 0.0
  %618 = vmatpush1.msra.mxu0 0.0
  %619 = vmatprep.subr.mxu0 0.0
  %620 = vmatpush1.msra.mxu0 0.0
  %621 = vmatprep.subr.mxu0 0.0
  %622 = vmatpush1.msra.mxu0 0.0
  %623 = vmatprep.subr.mxu0 0.0
  %624 = vmatpush1.msra.mxu0 0.0
  %625 = vmatprep.subr.mxu0 0.0
  %626 = vmatpush1.msra.mxu0 0.0
  %627 = vmatprep.subr.mxu0 0.0
  %628 = vmatpush1.msra.mxu0 0.0
  %629 = vmatprep.subr.mxu0 0.0
  %630 = vmatpush1.msra.mxu0 0.0
  %631 = vmatprep.subr.mxu0 0.0
  %632 = vmatpush1.msra.mxu0 0.0
  %633 = vmatprep.subr.mxu0 0.0
  %634 = vmatpush1.msra.mxu0 0.0
  %635 = vmatprep.subr.mxu0 0.0
  %636 = vmatpush1.msra.mxu0 0.0
  %637 = vmatprep.subr.mxu0 0.0
  %638 = vmatpush1.msra.mxu0 0.0
  %639 = vmatprep.subr.mxu0 0.0
  %640 = vmatpush1.msra.mxu0 0.0
  %641 = vmatprep.subr.mxu0 0.0
  %642 = vmatpush1.msra.mxu0 0.0
  %643 = vmatprep.subr.mxu0 0.0
  %644 = vmatpush1.msra.mxu0 0.0
  %645 = vmatprep.subr.mxu0 0.0
  %646 = vmatpush1.msra.mxu0 0.0
  %647 = vmatprep.subr.mxu0 0.0
  %648 = vmatpush1.msra.mxu0 0.0
  %649 = vmatprep.subr.mxu0 0.0
  %650 = vmatpush1.msra.mxu0 0.0
  %651 = vmatprep.subr.mxu0 0.0
  %652 = vmatpush1.msra.mxu0 0.0
  %653 = vmatprep.subr.mxu0 0.0
  %654 = vmatpush1.msra.mxu0 0.0
  %655 = vmatprep.subr.mxu0 0.0
  %656 = vmatpush1.msra.mxu0 0.0
  %657 = vmatprep.subr.mxu0 0.0
  %658 = vmatpush1.msra.mxu0 0.0
  %659 = vmatprep.subr.mxu0 0.0
  %660 = vmatpush1.msra.mxu0 0.0
  %661 = vmatprep.subr.mxu0 0.0
  %662 = vmatpush1.msra.mxu0 0.0
  %663 = vmatprep.subr.mxu0 0.0
  %664 = vmatpush1.msra.mxu0 0.0
  %665 = vmatprep.subr.mxu0 0.0
  %666 = vmatpush1.msra.mxu0 0.0
  %667 = vmatprep.mubr.f32.mxu0 0.0
  %668 = vmatmul.mubr.f32.gmra.mrb[0].mxu0 %v601
  %v669 = vpop.f32.mrb[0].mxu0
  %v670 = vadd.f32 0.0, %v669
  %v671 = vpop.f32.mrb[0].mxu0
  %672 = vdwg.mxu0
  %v673 = vadd.f32 %v600, %v670
  %v674 = vmul.f32 %v673, 0.5
  %v675 = vtanh.pop %v674
  %v676 = vmul.f32 %v675, %v37
  %v677 = vadd.f32 %v676, %v38
  %v678 = vmul.f32 %v677, %v588
  %680 = vrot.lane.b32.xlu0 %v677, 64
  %v681 = vpop.permute.xlu0 %680
  %v683 = vmul.f32 %v677, %v681
  %685 = vrot.lane.b32.xlu0 %v683, 32
  %v686 = vpop.permute.xlu0 %685
  %v688 = vadd.f32 %v678, %v686
  %v689 = vtanh.pop %v688
  %691 = vrot.lane.b32.xlu0 %v689, 64
  %v692 = vpop.permute.xlu0 %691
  %v694 = vmul.f32 %v677, %v692
  %696 = vrot.lane.b32.xlu0 %v694, 32
  %v697 = vpop.permute.xlu0 %696
  %699 = vst.msk [vmem:[#allocation3 + $0x20] sm:$0xff] %vm199, %v697
  %v700 = vld [vmem:[#allocation2 + $0x28] sm:$0xff]
  %v701 = vsel %vm199, %v697, 0
  %703 = vmatprep.subr.mxu0 0.0
  %704 = vmatpush1.msra.mxu0 %v49
  %705 = vmatprep.subr.mxu0 0.0
  %706 = vmatpush1.msra.mxu0 %v50
  %707 = vmatprep.subr.mxu0 0.0
  %708 = vmatpush1.msra.mxu0 %v51
  %709 = vmatprep.subr.mxu0 0.0
  %710 = vmatpush1.msra.mxu0 %v52
  %711 = vmatprep.subr.mxu0 0.0
  %712 = vmatpush1.msra.mxu0 0.0
  %713 = vmatprep.subr.mxu0 0.0
  %714 = vmatpush1.msra.mxu0 0.0
  %715 = vmatprep.subr.mxu0 0.0
  %716 = vmatpush1.msra.mxu0 0.0
  %717 = vmatprep.subr.mxu0 0.0
  %718 = vmatpush1.msra.mxu0 0.0
  %719 = vmatprep.subr.mxu0 0.0
  %720 = vmatpush1.msra.mxu0 0.0
  %721 = vmatprep.subr.mxu0 0.0
  %722 = vmatpush1.msra.mxu0 0.0
  %723 = vmatprep.subr.mxu0 0.0
  %724 = vmatpush1.msra.mxu0 0.0
  %725 = vmatprep.subr.mxu0 0.0
  %726 = vmatpush1.msra.mxu0 0.0
  %727 = vmatprep.subr.mxu0 0.0
  %728 = vmatpush1.msra.mxu0 0.0
  %729 = vmatprep.subr.mxu0 0.0
  %730 = vmatpush1.msra.mxu0 0.0
  %731 = vmatprep.subr.mxu0 0.0
  %732 = vmatpush1.msra.mxu0 0.0
  %733 = vmatprep.subr.mxu0 0.0
  %734 = vmatpush1.msra.mxu0 0.0
  %735 = vmatprep.subr.mxu0 0.0
  %736 = vmatpush1.msra.mxu0 0.0
  %737 = vmatprep.subr.mxu0 0.0
  %738 = vmatpush1.msra.mxu0 0.0
  %739 = vmatprep.subr.mxu0 0.0
  %740 = vmatpush1.msra.mxu0 0.0
  %741 = vmatprep.subr.mxu0 0.0
  %742 = vmatpush1.msra.mxu0 0.0
  %743 = vmatprep.subr.mxu0 0.0
  %744 = vmatpush1.msra.mxu0 0.0
  %745 = vmatprep.subr.mxu0 0.0
  %746 = vmatpush1.msra.mxu0 0.0
  %747 = vmatprep.subr.mxu0 0.0
  %748 = vmatpush1.msra.mxu0 0.0
  %749 = vmatprep.subr.mxu0 0.0
  %750 = vmatpush1.msra.mxu0 0.0
  %751 = vmatprep.subr.mxu0 0.0
  %752 = vmatpush1.msra.mxu0 0.0
  %753 = vmatprep.subr.mxu0 0.0
  %754 = vmatpush1.msra.mxu0 0.0
  %755 = vmatprep.subr.mxu0 0.0
  %756 = vmatpush1.msra.mxu0 0.0
  %757 = vmatprep.subr.mxu0 0.0
  %758 = vmatpush1.msra.mxu0 0.0
  %759 = vmatprep.subr.mxu0 0.0
  %760 = vmatpush1.msra.mxu0 0.0
  %761 = vmatprep.subr.mxu0 0.0
  %762 = vmatpush1.msra.mxu0 0.0
  %763 = vmatprep.subr.mxu0 0.0
  %764 = vmatpush1.msra.mxu0 0.0
  %765 = vmatprep.subr.mxu0 0.0
  %766 = vmatpush1.msra.mxu0 0.0
  %767 = vmatprep.mubr.f32.mxu0 0.0
  %768 = vmatmul.mubr.f32.gmra.mrb[0].mxu0 %v701
  %v769 = vpop.f32.mrb[0].mxu0
  %v770 = vadd.f32 0.0, %v769
  %v771 = vpop.f32.mrb[0].mxu0
  %772 = vdwg.mxu0
  %v773 = vadd.f32 %v700, %v770
  %v774 = vmul.f32 %v773, 0.5
  %v775 = vtanh.pop %v774
  %v776 = vmul.f32 %v775, %v37
  %v777 = vadd.f32 %v776, %v38
  %v778 = vmul.f32 %v777, %v688
  %780 = vrot.lane.b32.xlu0 %v777, 64
  %v781 = vpop.permute.xlu0 %780
  %v783 = vmul.f32 %v777, %v781
  %785 = vrot.lane.b32.xlu0 %v783, 32
  %v786 = vpop.permute.xlu0 %785
  %v788 = vadd.f32 %v778, %v786
  %v789 = vtanh.pop %v788
  %791 = vrot.lane.b32.xlu0 %v789, 64
  %v792 = vpop.permute.xlu0 %791
  %v794 = vmul.f32 %v777, %v792
  %796 = vrot.lane.b32.xlu0 %v794, 32
  %v797 = vpop.permute.xlu0 %796
  %799 = vst.msk [vmem:[#allocation3 + $0x28] sm:$0xff] %vm199, %v797
  %v800 = vld [vmem:[#allocation2 + $0x30] sm:$0xff]
  %v801 = vsel %vm199, %v797, 0
  %803 = vmatprep.subr.mxu0 0.0
  %804 = vmatpush1.msra.mxu0 %v49
  %805 = vmatprep.subr.mxu0 0.0
  %806 = vmatpush1.msra.mxu0 %v50
  %807 = vmatprep.subr.mxu0 0.0
  %808 = vmatpush1.msra.mxu0 %v51
  %809 = vmatprep.subr.mxu0 0.0
  %810 = vmatpush1.msra.mxu0 %v52
  %811 = vmatprep.subr.mxu0 0.0
  %812 = vmatpush1.msra.mxu0 0.0
  %813 = vmatprep.subr.mxu0 0.0
  %814 = vmatpush1.msra.mxu0 0.0
  %815 = vmatprep.subr.mxu0 0.0
  %816 = vmatpush1.msra.mxu0 0.0
  %817 = vmatprep.subr.mxu0 0.0
  %818 = vmatpush1.msra.mxu0 0.0
  %819 = vmatprep.subr.mxu0 0.0
  %820 = vmatpush1.msra.mxu0 0.0
  %821 = vmatprep.subr.mxu0 0.0
  %822 = vmatpush1.msra.mxu0 0.0
  %823 = vmatprep.subr.mxu0 0.0
  %824 = vmatpush1.msra.mxu0 0.0
  %825 = vmatprep.subr.mxu0 0.0
  %826 = vmatpush1.msra.mxu0 0.0
  %827 = vmatprep.subr.mxu0 0.0
  %828 = vmatpush1.msra.mxu0 0.0
  %829 = vmatprep.subr.mxu0 0.0
  %830 = vmatpush1.msra.mxu0 0.0
  %831 = vmatprep.subr.mxu0 0.0
  %832 = vmatpush1.msra.mxu0 0.0
  %833 = vmatprep.subr.mxu0 0.0
  %834 = vmatpush1.msra.mxu0 0.0
  %835 = vmatprep.subr.mxu0 0.0
  %836 = vmatpush1.msra.mxu0 0.0
  %837 = vmatprep.subr.mxu0 0.0
  %838 = vmatpush1.msra.mxu0 0.0
  %839 = vmatprep.subr.mxu0 0.0
  %840 = vmatpush1.msra.mxu0 0.0
  %841 = vmatprep.subr.mxu0 0.0
  %842 = vmatpush1.msra.mxu0 0.0
  %843 = vmatprep.subr.mxu0 0.0
  %844 = vmatpush1.msra.mxu0 0.0
  %845 = vmatprep.subr.mxu0 0.0
  %846 = vmatpush1.msra.mxu0 0.0
  %847 = vmatprep.subr.mxu0 0.0
  %848 = vmatpush1.msra.mxu0 0.0
  %849 = vmatprep.subr.mxu0 0.0
  %850 = vmatpush1.msra.mxu0 0.0
  %851 = vmatprep.subr.mxu0 0.0
  %852 = vmatpush1.msra.mxu0 0.0
  %853 = vmatprep.subr.mxu0 0.0
  %854 = vmatpush1.msra.mxu0 0.0
  %855 = vmatprep.subr.mxu0 0.0
  %856 = vmatpush1.msra.mxu0 0.0
  %857 = vmatprep.subr.mxu0 0.0
  %858 = vmatpush1.msra.mxu0 0.0
  %859 = vmatprep.subr.mxu0 0.0
  %860 = vmatpush1.msra.mxu0 0.0
  %861 = vmatprep.subr.mxu0 0.0
  %862 = vmatpush1.msra.mxu0 0.0
  %863 = vmatprep.subr.mxu0 0.0
  %864 = vmatpush1.msra.mxu0 0.0
  %865 = vmatprep.subr.mxu0 0.0
  %866 = vmatpush1.msra.mxu0 0.0
  %867 = vmatprep.mubr.f32.mxu0 0.0
  %868 = vmatmul.mubr.f32.gmra.mrb[0].mxu0 %v801
  %v869 = vpop.f32.mrb[0].mxu0
  %v870 = vadd.f32 0.0, %v869
  %v871 = vpop.f32.mrb[0].mxu0
  %872 = vdwg.mxu0
  %v873 = vadd.f32 %v800, %v870
  %v874 = vmul.f32 %v873, 0.5
  %v875 = vtanh.pop %v874
  %v876 = vmul.f32 %v875, %v37
  %v877 = vadd.f32 %v876, %v38
  %v878 = vmul.f32 %v877, %v788
  %880 = vrot.lane.b32.xlu0 %v877, 64
  %v881 = vpop.permute.xlu0 %880
  %v883 = vmul.f32 %v877, %v881
  %885 = vrot.lane.b32.xlu0 %v883, 32
  %v886 = vpop.permute.xlu0 %885
  %v888 = vadd.f32 %v878, %v886
  %v889 = vtanh.pop %v888
  %891 = vrot.lane.b32.xlu0 %v889, 64
  %v892 = vpop.permute.xlu0 %891
  %v894 = vmul.f32 %v877, %v892
  %896 = vrot.lane.b32.xlu0 %v894, 32
  %v897 = vpop.permute.xlu0 %896
  %899 = vst.msk [vmem:[#allocation3 + $0x30] sm:$0xff] %vm199, %v897
  %v900 = vld [vmem:[#allocation2 + $0x38] sm:$0xff]
  %v901 = vsel %vm199, %v897, 0
  %903 = vmatprep.subr.mxu0 0.0
  %904 = vmatpush1.msra.mxu0 %v49
  %905 = vmatprep.subr.mxu0 0.0
  %906 = vmatpush1.msra.mxu0 %v50
  %907 = vmatprep.subr.mxu0 0.0
  %908 = vmatpush1.msra.mxu0 %v51
  %909 = vmatprep.subr.mxu0 0.0
  %910 = vmatpush1.msra.mxu0 %v52
  %911 = vmatprep.subr.mxu0 0.0
  %912 = vmatpush1.msra.mxu0 0.0
  %913 = vmatprep.subr.mxu0 0.0
  %914 = vmatpush1.msra.mxu0 0.0
  %915 = vmatprep.subr.mxu0 0.0
  %916 = vmatpush1.msra.mxu0 0.0
  %917 = vmatprep.subr.mxu0 0.0
  %918 = vmatpush1.msra.mxu0 0.0
  %919 = vmatprep.subr.mxu0 0.0
  %920 = vmatpush1.msra.mxu0 0.0
  %921 = vmatprep.subr.mxu0 0.0
  %922 = vmatpush1.msra.mxu0 0.0
  %923 = vmatprep.subr.mxu0 0.0
  %924 = vmatpush1.msra.mxu0 0.0
  %925 = vmatprep.subr.mxu0 0.0
  %926 = vmatpush1.msra.mxu0 0.0
  %927 = vmatprep.subr.mxu0 0.0
  %928 = vmatpush1.msra.mxu0 0.0
  %929 = vmatprep.subr.mxu0 0.0
  %930 = vmatpush1.msra.mxu0 0.0
  %931 = vmatprep.subr.mxu0 0.0
  %932 = vmatpush1.msra.mxu0 0.0
  %933 = vmatprep.subr.mxu0 0.0
  %934 = vmatpush1.msra.mxu0 0.0
  %935 = vmatprep.subr.mxu0 0.0
  %936 = vmatpush1.msra.mxu0 0.0
  %937 = vmatprep.subr.mxu0 0.0
  %938 = vmatpush1.msra.mxu0 0.0
  %939 = vmatprep.subr.mxu0 0.0
  %940 = vmatpush1.msra.mxu0 0.0
  %941 = vmatprep.subr.mxu0 0.0
  %942 = vmatpush1.msra.mxu0 0.0
  %943 = vmatprep.subr.mxu0 0.0
  %944 = vmatpush1.msra.mxu0 0.0
  %945 = vmatprep.subr.mxu0 0.0
  %946 = vmatpush1.msra.mxu0 0.0
  %947 = vmatprep.subr.mxu0 0.0
  %948 = vmatpush1.msra.mxu0 0.0
  %949 = vmatprep.subr.mxu0 0.0
  %950 = vmatpush1.msra.mxu0 0.0
  %951 = vmatprep.subr.mxu0 0.0
  %952 = vmatpush1.msra.mxu0 0.0
  %953 = vmatprep.subr.mxu0 0.0
  %954 = vmatpush1.msra.mxu0 0.0
  %955 = vmatprep.subr.mxu0 0.0
  %956 = vmatpush1.msra.mxu0 0.0
  %957 = vmatprep.subr.mxu0 0.0
  %958 = vmatpush1.msra.mxu0 0.0
  %959 = vmatprep.subr.mxu0 0.0
  %960 = vmatpush1.msra.mxu0 0.0
  %961 = vmatprep.subr.mxu0 0.0
  %962 = vmatpush1.msra.mxu0 0.0
  %963 = vmatprep.subr.mxu0 0.0
  %964 = vmatpush1.msra.mxu0 0.0
  %965 = vmatprep.subr.mxu0 0.0
  %966 = vmatpush1.msra.mxu0 0.0
  %967 = vmatprep.mubr.f32.mxu0 0.0
  %968 = vmatmul.mubr.f32.gmra.mrb[0].mxu0 %v901
  %v969 = vpop.f32.mrb[0].mxu0
  %v970 = vadd.f32 0.0, %v969
  %v971 = vpop.f32.mrb[0].mxu0
  %972 = vdwg.mxu0
  %v973 = vadd.f32 %v900, %v970
  %v974 = vmul.f32 %v973, 0.5
  %v975 = vtanh.pop %v974
  %v976 = vmul.f32 %v975, %v37
  %v977 = vadd.f32 %v976, %v38
  %v978 = vmul.f32 %v977, %v888
  %980 = vrot.lane.b32.xlu0 %v977, 64
  %v981 = vpop.permute.xlu0 %980
  %v983 = vmul.f32 %v977, %v981
  %985 = vrot.lane.b32.xlu0 %v983, 32
  %v986 = vpop.permute.xlu0 %985
  %v988 = vadd.f32 %v978, %v986
  %v989 = vtanh.pop %v988
  %991 = vrot.lane.b32.xlu0 %v989, 64
  %v992 = vpop.permute.xlu0 %991
  %v994 = vmul.f32 %v977, %v992
  %996 = vrot.lane.b32.xlu0 %v994, 32
  %v997 = vpop.permute.xlu0 %996
  %999 = vst.msk [vmem:[#allocation3 + $0x38] sm:$0xff] %vm199, %v997
  %v1000 = vld [vmem:[#allocation3] sm:$0xff]
  %v1001 = vld [vmem:[#allocation3 + $0x8] sm:$0xff]
  %v1002 = vld [vmem:[#allocation3 + $0x10] sm:$0xff]
  %v1003 = vld [vmem:[#allocation3 + $0x18] sm:$0xff]
  %v1004 = vld [vmem:[#allocation3 + $0x20] sm:$0xff]
  %v1005 = vld [vmem:[#allocation3 + $0x28] sm:$0xff]
  %v1006 = vld [vmem:[#allocation3 + $0x30] sm:$0xff]
  %v1007 = vld [vmem:[#allocation3 + $0x38] sm:$0xff]
  %v1008 = vld [vmem:[%s4] sm:$0xff]
  %v1009 = vld [vmem:[%s4 + $0x8] sm:$0xff]
  %v1010 = vld [vmem:[%s4 + $0x10] sm:$0xff]
  %v1011 = vld [vmem:[%s4 + $0x18] sm:$0xff]
  %v1012 = vld [vmem:[%s5] sm:$0xff]
  %v1013 = vld [vmem:[%s5 + $0x8] sm:$0xff]
  %v1014 = vld [vmem:[%s5 + $0x10] sm:$0xff]
  %v1015 = vld [vmem:[%s5 + $0x18] sm:$0xff]
  %v1016 = vld [vmem:[%s6] sm:$0x1]
  %v1018 = vlaneseq
  %v1019 = vshrl.u32 %v1018, 7
  %v1020 = vsub.s32 0, %v1019
  %v1021 = vrot.slane %v1016, %v1020
  %v1024 = vsel %vm199, %v1000, 0
  %v1027 = vsel %vm199, %v1001, 0
  %v1030 = vsel %vm199, %v1002, 0
  %v1033 = vsel %vm199, %v1003, 0
  %v1036 = vsel %vm199, %v1004, 0
  %v1039 = vsel %vm199, %v1005, 0
  %v1042 = vsel %vm199, %v1006, 0
  %v1045 = vsel %vm199, %v1007, 0
  %1047 = vmatprep.subr.mxu0 0.0
  %1048 = vmatpush1.msra.mxu0 %v1008
  %1049 = vmatprep.subr.mxu0 0.0
  %1050 = vmatpush1.msra.mxu0 %v1009
  %1051 = vmatprep.subr.mxu0 0.0
  %1052 = vmatpush1.msra.mxu0 %v1010
  %1053 = vmatprep.subr.mxu0 0.0
  %1054 = vmatpush1.msra.mxu0 %v1011
  %1055 = vmatprep.subr.mxu0 0.0
  %1056 = vmatpush1.msra.mxu0 0.0
  %1057 = vmatprep.subr.mxu0 0.0
  %1058 = vmatpush1.msra.mxu0 0.0
  %1059 = vmatprep.subr.mxu0 0.0
  %1060 = vmatpush1.msra.mxu0 0.0
  %1061 = vmatprep.subr.mxu0 0.0
  %1062 = vmatpush1.msra.mxu0 0.0
  %1063 = vmatprep.subr.mxu0 0.0
  %1064 = vmatpush1.msra.mxu0 0.0
  %1065 = vmatprep.subr.mxu0 0.0
  %1066 = vmatpush1.msra.mxu0 0.0
  %1067 = vmatprep.subr.mxu0 0.0
  %1068 = vmatpush1.msra.mxu0 0.0
  %1069 = vmatprep.subr.mxu0 0.0
  %1070 = vmatpush1.msra.mxu0 0.0
  %1071 = vmatprep.subr.mxu0 0.0
  %1072 = vmatpush1.msra.mxu0 0.0
  %1073 = vmatprep.subr.mxu0 0.0
  %1074 = vmatpush1.msra.mxu0 0.0
  %1075 = vmatprep.subr.mxu0 0.0
  %1076 = vmatpush1.msra.mxu0 0.0
  %1077 = vmatprep.subr.mxu0 0.0
  %1078 = vmatpush1.msra.mxu0 0.0
  %1079 = vmatprep.subr.mxu0 0.0
  %1080 = vmatpush1.msra.mxu0 0.0
  %1081 = vmatprep.subr.mxu0 0.0
  %1082 = vmatpush1.msra.mxu0 0.0
  %1083 = vmatprep.subr.mxu0 0.0
  %1084 = vmatpush1.msra.mxu0 0.0
  %1085 = vmatprep.subr.mxu0 0.0
  %1086 = vmatpush1.msra.mxu0 0.0
  %1087 = vmatprep.subr.mxu0 0.0
  %1088 = vmatpush1.msra.mxu0 0.0
  %1089 = vmatprep.subr.mxu0 0.0
  %1090 = vmatpush1.msra.mxu0 0.0
  %1091 = vmatprep.subr.mxu0 0.0
  %1092 = vmatpush1.msra.mxu0 0.0
  %1093 = vmatprep.subr.mxu0 0.0
  %1094 = vmatpush1.msra.mxu0 0.0
  %1095 = vmatprep.subr.mxu0 0.0
  %1096 = vmatpush1.msra.mxu0 0.0
  %1097 = vmatprep.subr.mxu0 0.0
  %1098 = vmatpush1.msra.mxu0 0.0
  %1099 = vmatprep.subr.mxu0 0.0
  %1100 = vmatpush1.msra.mxu0 0.0
  %1101 = vmatprep.subr.mxu0 0.0
  %1102 = vmatpush1.msra.mxu0 0.0
  %1103 = vmatprep.subr.mxu0 0.0
  %1104 = vmatpush1.msra.mxu0 0.0
  %1105 = vmatprep.subr.mxu0 0.0
  %1106 = vmatpush1.msra.mxu0 0.0
  %1107 = vmatprep.subr.mxu0 0.0
  %1108 = vmatpush1.msra.mxu0 0.0
  %1109 = vmatprep.subr.mxu0 0.0
  %1110 = vmatpush1.msra.mxu0 0.0
  %1111 = vmatprep.mubr.f32.mxu0 0.0
  %1112 = vmatmul.mubr.f32.gmra.mrb[0].mxu0 %v1024
  %v1113 = vpop.f32.mrb[0].mxu0
  %v1114 = vadd.f32 %v1021, %v1113
  %v1115 = vpop.f32.mrb[0].mxu0
  %1116 = vmatprep.mubr.f32.mxu0 0.0
  %1117 = vmatmul.mubr.f32.gmra.mrb[0].mxu0 %v1027
  %v1118 = vpop.f32.mrb[0].mxu0
  %v1119 = vadd.f32 %v1021, %v1118
  %v1120 = vpop.f32.mrb[0].mxu0
  %1121 = vmatprep.mubr.f32.mxu0 0.0
  %1122 = vmatmul.mubr.f32.gmra.mrb[0].mxu0 %v1030
  %v1123 = vpop.f32.mrb[0].mxu0
  %v1124 = vadd.f32 %v1021, %v1123
  %v1125 = vpop.f32.mrb[0].mxu0
  %1126 = vmatprep.mubr.f32.mxu0 0.0
  %1127 = vmatmul.mubr.f32.gmra.mrb[0].mxu0 %v1033
  %v1128 = vpop.f32.mrb[0].mxu0
  %v1129 = vadd.f32 %v1021, %v1128
  %v1130 = vpop.f32.mrb[0].mxu0
  %1131 = vmatprep.mubr.f32.mxu0 0.0
  %1132 = vmatmul.mubr.f32.gmra.mrb[0].mxu0 %v1036
  %v1133 = vpop.f32.mrb[0].mxu0
  %v1134 = vadd.f32 %v1021, %v1133
  %v1135 = vpop.f32.mrb[0].mxu0
  %1136 = vmatprep.mubr.f32.mxu0 0.0
  %1137 = vmatmul.mubr.f32.gmra.mrb[0].mxu0 %v1039
  %v1138 = vpop.f32.mrb[0].mxu0
  %v1139 = vadd.f32 %v1021, %v1138
  %v1140 = vpop.f32.mrb[0].mxu0
  %1141 = vmatprep.mubr.f32.mxu0 0.0
  %1142 = vmatmul.mubr.f32.gmra.mrb[0].mxu0 %v1042
  %v1143 = vpop.f32.mrb[0].mxu0
  %v1144 = vadd.f32 %v1021, %v1143
  %v1145 = vpop.f32.mrb[0].mxu0
  %1146 = vmatprep.mubr.f32.mxu0 0.0
  %1147 = vmatmul.mubr.f32.gmra.mrb[0].mxu0 %v1045
  %v1148 = vpop.f32.mrb[0].mxu0
  %v1149 = vadd.f32 %v1021, %v1148
  %v1150 = vpop.f32.mrb[0].mxu0
  %1151 = vdwg.mxu0
  %1152 = vst [vmem:[#allocation2] sm:$0xff] %v1114
  %1153 = vst [vmem:[#allocation2 + $0x8] sm:$0xff] %v1119
  %1154 = vst [vmem:[#allocation2 + $0x10] sm:$0xff] %v1124
  %1155 = vst [vmem:[#allocation2 + $0x18] sm:$0xff] %v1129
  %1156 = vst [vmem:[#allocation2 + $0x20] sm:$0xff] %v1134
  %1157 = vst [vmem:[#allocation2 + $0x28] sm:$0xff] %v1139
  %1158 = vst [vmem:[#allocation2 + $0x30] sm:$0xff] %v1144
  %1159 = vst [vmem:[#allocation2 + $0x38] sm:$0xff] %v1149
  %v1160 = vld [vmem:[#allocation2] sm:$0xff]
  %1161 = vmatprep.subr.mxu0 0.0
  %1162 = vmatpush1.msra.mxu0 %v1012
  %1163 = vmatprep.subr.mxu0 0.0
  %1164 = vmatpush1.msra.mxu0 %v1013
  %1165 = vmatprep.subr.mxu0 0.0
  %1166 = vmatpush1.msra.mxu0 %v1014
  %1167 = vmatprep.subr.mxu0 0.0
  %1168 = vmatpush1.msra.mxu0 %v1015
  %1169 = vmatprep.subr.mxu0 0.0
  %1170 = vmatpush1.msra.mxu0 0.0
  %1171 = vmatprep.subr.mxu0 0.0
  %1172 = vmatpush1.msra.mxu0 0.0
  %1173 = vmatprep.subr.mxu0 0.0
  %1174 = vmatpush1.msra.mxu0 0.0
  %1175 = vmatprep.subr.mxu0 0.0
  %1176 = vmatpush1.msra.mxu0 0.0
  %1177 = vmatprep.subr.mxu0 0.0
  %1178 = vmatpush1.msra.mxu0 0.0
  %1179 = vmatprep.subr.mxu0 0.0
  %1180 = vmatpush1.msra.mxu0 0.0
  %1181 = vmatprep.subr.mxu0 0.0
  %1182 = vmatpush1.msra.mxu0 0.0
  %1183 = vmatprep.subr.mxu0 0.0
  %1184 = vmatpush1.msra.mxu0 0.0
  %1185 = vmatprep.subr.mxu0 0.0
  %1186 = vmatpush1.msra.mxu0 0.0
  %1187 = vmatprep.subr.mxu0 0.0
  %1188 = vmatpush1.msra.mxu0 0.0
  %1189 = vmatprep.subr.mxu0 0.0
  %1190 = vmatpush1.msra.mxu0 0.0
  %1191 = vmatprep.subr.mxu0 0.0
  %1192 = vmatpush1.msra.mxu0 0.0
  %1193 = vmatprep.subr.mxu0 0.0
  %1194 = vmatpush1.msra.mxu0 0.0
  %1195 = vmatprep.subr.mxu0 0.0
  %1196 = vmatpush1.msra.mxu0 0.0
  %1197 = vmatprep.subr.mxu0 0.0
  %1198 = vmatpush1.msra.mxu0 0.0
  %1199 = vmatprep.subr.mxu0 0.0
  %1200 = vmatpush1.msra.mxu0 0.0
  %1201 = vmatprep.subr.mxu0 0.0
  %1202 = vmatpush1.msra.mxu0 0.0
  %1203 = vmatprep.subr.mxu0 0.0
  %1204 = vmatpush1.msra.mxu0 0.0
  %1205 = vmatprep.subr.mxu0 0.0
  %1206 = vmatpush1.msra.mxu0 0.0
  %1207 = vmatprep.subr.mxu0 0.0
  %1208 = vmatpush1.msra.mxu0 0.0
  %1209 = vmatprep.subr.mxu0 0.0
  %1210 = vmatpush1.msra.mxu0 0.0
  %1211 = vmatprep.subr.mxu0 0.0
  %1212 = vmatpush1.msra.mxu0 0.0
  %1213 = vmatprep.subr.mxu0 0.0
  %1214 = vmatpush1.msra.mxu0 0.0
  %1215 = vmatprep.subr.mxu0 0.0
  %1216 = vmatpush1.msra.mxu0 0.0
  %1217 = vmatprep.subr.mxu0 0.0
  %1218 = vmatpush1.msra.mxu0 0.0
  %1219 = vmatprep.subr.mxu0 0.0
  %1220 = vmatpush1.msra.mxu0 0.0
  %1221 = vmatprep.subr.mxu0 0.0
  %1222 = vmatpush1.msra.mxu0 0.0
  %1223 = vmatprep.subr.mxu0 0.0
  %1224 = vmatpush1.msra.mxu0 0.0
  %1225 = vmatprep.mubr.f32.mxu0 0.0
  %1226 = vmatmul.mubr.f32.gmra.mrb[0].mxu0 %v201
  %v1227 = vpop.f32.mrb[0].mxu0
  %v1228 = vadd.f32 0.0, %v1227
  %v1229 = vpop.f32.mrb[0].mxu0
  %1230 = vdwg.mxu0
  %v1231 = vadd.f32 %v1160, %v1228
  %v1232 = vmul.f32 %v1231, 0.5
  %v1233 = vtanh.pop %v1232
  %v1234 = vmul.f32 %v1233, %v37
  %v1235 = vadd.f32 %v1234, %v38
  %v1236 = vmul.f32 %v1235, 0.0
  %1238 = vrot.lane.b32.xlu0 %v1235, 64
  %v1239 = vpop.permute.xlu0 %1238
  %v1241 = vmul.f32 %v1235, %v1239
  %1243 = vrot.lane.b32.xlu0 %v1241, 32
  %v1244 = vpop.permute.xlu0 %1243
  %v1246 = vadd.f32 %v1236, %v1244
  %v1247 = vtanh.pop %v1246
  %1249 = vrot.lane.b32.xlu0 %v1247, 64
  %v1250 = vpop.permute.xlu0 %1249
  %v1252 = vmul.f32 %v1235, %v1250
  %v1253 = vld [vmem:[#allocation2 + $0x8] sm:$0xff]
  %1255 = vrot.lane.b32.xlu0 %v1252, 32
  %v1256 = vpop.permute.xlu0 %1255
  %v1257 = vsel %vm199, %v1256, 0
  %1259 = vmatprep.subr.mxu0 0.0
  %1260 = vmatpush1.msra.mxu0 %v1012
  %1261 = vmatprep.subr.mxu0 0.0
  %1262 = vmatpush1.msra.mxu0 %v1013
  %1263 = vmatprep.subr.mxu0 0.0
  %1264 = vmatpush1.msra.mxu0 %v1014
  %1265 = vmatprep.subr.mxu0 0.0
  %1266 = vmatpush1.msra.mxu0 %v1015
  %1267 = vmatprep.subr.mxu0 0.0
  %1268 = vmatpush1.msra.mxu0 0.0
  %1269 = vmatprep.subr.mxu0 0.0
  %1270 = vmatpush1.msra.mxu0 0.0
  %1271 = vmatprep.subr.mxu0 0.0
  %1272 = vmatpush1.msra.mxu0 0.0
  %1273 = vmatprep.subr.mxu0 0.0
  %1274 = vmatpush1.msra.mxu0 0.0
  %1275 = vmatprep.subr.mxu0 0.0
  %1276 = vmatpush1.msra.mxu0 0.0
  %1277 = vmatprep.subr.mxu0 0.0
  %1278 = vmatpush1.msra.mxu0 0.0
  %1279 = vmatprep.subr.mxu0 0.0
  %1280 = vmatpush1.msra.mxu0 0.0
  %1281 = vmatprep.subr.mxu0 0.0
  %1282 = vmatpush1.msra.mxu0 0.0
  %1283 = vmatprep.subr.mxu0 0.0
  %1284 = vmatpush1.msra.mxu0 0.0
  %1285 = vmatprep.subr.mxu0 0.0
  %1286 = vmatpush1.msra.mxu0 0.0
  %1287 = vmatprep.subr.mxu0 0.0
  %1288 = vmatpush1.msra.mxu0 0.0
  %1289 = vmatprep.subr.mxu0 0.0
  %1290 = vmatpush1.msra.mxu0 0.0
  %1291 = vmatprep.subr.mxu0 0.0
  %1292 = vmatpush1.msra.mxu0 0.0
  %1293 = vmatprep.subr.mxu0 0.0
  %1294 = vmatpush1.msra.mxu0 0.0
  %1295 = vmatprep.subr.mxu0 0.0
  %1296 = vmatpush1.msra.mxu0 0.0
  %1297 = vmatprep.subr.mxu0 0.0
  %1298 = vmatpush1.msra.mxu0 0.0
  %1299 = vmatprep.subr.mxu0 0.0
  %1300 = vmatpush1.msra.mxu0 0.0
  %1301 = vmatprep.subr.mxu0 0.0
  %1302 = vmatpush1.msra.mxu0 0.0
  %1303 = vmatprep.subr.mxu0 0.0
  %1304 = vmatpush1.msra.mxu0 0.0
  %1305 = vmatprep.subr.mxu0 0.0
  %1306 = vmatpush1.msra.mxu0 0.0
  %1307 = vmatprep.subr.mxu0 0.0
  %1308 = vmatpush1.msra.mxu0 0.0
  %1309 = vmatprep.subr.mxu0 0.0
  %1310 = vmatpush1.msra.mxu0 0.0
  %1311 = vmatprep.subr.mxu0 0.0
  %1312 = vmatpush1.msra.mxu0 0.0
  %1313 = vmatprep.subr.mxu0 0.0
  %1314 = vmatpush1.msra.mxu0 0.0
  %1315 = vmatprep.subr.mxu0 0.0
  %1316 = vmatpush1.msra.mxu0 0.0
  %1317 = vmatprep.subr.mxu0 0.0
  %1318 = vmatpush1.msra.mxu0 0.0
  %1319 = vmatprep.subr.mxu0 0.0
  %1320 = vmatpush1.msra.mxu0 0.0
  %1321 = vmatprep.subr.mxu0 0.0
  %1322 = vmatpush1.msra.mxu0 0.0
  %1323 = vmatprep.mubr.f32.mxu0 0.0
  %1324 = vmatmul.mubr.f32.gmra.mrb[0].mxu0 %v1257
  %v1325 = vpop.f32.mrb[0].mxu0
  %v1326 = vadd.f32 0.0, %v1325
  %v1327 = vpop.f32.mrb[0].mxu0
  %1328 = vdwg.mxu0
  %v1329 = vadd.f32 %v1253, %v1326
  %v1330 = vmul.f32 %v1329, 0.5
  %v1331 = vtanh.pop %v1330
  %v1332 = vmul.f32 %v1331, %v37
  %v1333 = vadd.f32 %v1332, %v38
  %v1334 = vmul.f32 %v1333, %v1246
  %1336 = vrot.lane.b32.xlu0 %v1333, 64
  %v1337 = vpop.permute.xlu0 %1336
  %v1339 = vmul.f32 %v1333, %v1337
  %1341 = vrot.lane.b32.xlu0 %v1339, 32
  %v1342 = vpop.permute.xlu0 %1341
  %v1344 = vadd.f32 %v1334, %v1342
  %v1345 = vtanh.pop %v1344
  %1347 = vrot.lane.b32.xlu0 %v1345, 64
  %v1348 = vpop.permute.xlu0 %1347
  %v1350 = vmul.f32 %v1333, %v1348
  %v1351 = vld [vmem:[#allocation2 + $0x10] sm:$0xff]
  %1353 = vrot.lane.b32.xlu0 %v1350, 32
  %v1354 = vpop.permute.xlu0 %1353
  %v1355 = vsel %vm199, %v1354, 0
  %1357 = vmatprep.subr.mxu0 0.0
  %1358 = vmatpush1.msra.mxu0 %v1012
  %1359 = vmatprep.subr.mxu0 0.0
  %1360 = vmatpush1.msra.mxu0 %v1013
  %1361 = vmatprep.subr.mxu0 0.0
  %1362 = vmatpush1.msra.mxu0 %v1014
  %1363 = vmatprep.subr.mxu0 0.0
  %1364 = vmatpush1.msra.mxu0 %v1015
  %1365 = vmatprep.subr.mxu0 0.0
  %1366 = vmatpush1.msra.mxu0 0.0
  %1367 = vmatprep.subr.mxu0 0.0
  %1368 = vmatpush1.msra.mxu0 0.0
  %1369 = vmatprep.subr.mxu0 0.0
  %1370 = vmatpush1.msra.mxu0 0.0
  %1371 = vmatprep.subr.mxu0 0.0
  %1372 = vmatpush1.msra.mxu0 0.0
  %1373 = vmatprep.subr.mxu0 0.0
  %1374 = vmatpush1.msra.mxu0 0.0
  %1375 = vmatprep.subr.mxu0 0.0
  %1376 = vmatpush1.msra.mxu0 0.0
  %1377 = vmatprep.subr.mxu0 0.0
  %1378 = vmatpush1.msra.mxu0 0.0
  %1379 = vmatprep.subr.mxu0 0.0
  %1380 = vmatpush1.msra.mxu0 0.0
  %1381 = vmatprep.subr.mxu0 0.0
  %1382 = vmatpush1.msra.mxu0 0.0
  %1383 = vmatprep.subr.mxu0 0.0
  %1384 = vmatpush1.msra.mxu0 0.0
  %1385 = vmatprep.subr.mxu0 0.0
  %1386 = vmatpush1.msra.mxu0 0.0
  %1387 = vmatprep.subr.mxu0 0.0
  %1388 = vmatpush1.msra.mxu0 0.0
  %1389 = vmatprep.subr.mxu0 0.0
  %1390 = vmatpush1.msra.mxu0 0.0
  %1391 = vmatprep.subr.mxu0 0.0
  %1392 = vmatpush1.msra.mxu0 0.0
  %1393 = vmatprep.subr.mxu0 0.0
  %1394 = vmatpush1.msra.mxu0 0.0
  %1395 = vmatprep.subr.mxu0 0.0
  %1396 = vmatpush1.msra.mxu0 0.0
  %1397 = vmatprep.subr.mxu0 0.0
  %1398 = vmatpush1.msra.mxu0 0.0
  %1399 = vmatprep.subr.mxu0 0.0
  %1400 = vmatpush1.msra.mxu0 0.0
  %1401 = vmatprep.subr.mxu0 0.0
  %1402 = vmatpush1.msra.mxu0 0.0
  %1403 = vmatprep.subr.mxu0 0.0
  %1404 = vmatpush1.msra.mxu0 0.0
  %1405 = vmatprep.subr.mxu0 0.0
  %1406 = vmatpush1.msra.mxu0 0.0
  %1407 = vmatprep.subr.mxu0 0.0
  %1408 = vmatpush1.msra.mxu0 0.0
  %1409 = vmatprep.subr.mxu0 0.0
  %1410 = vmatpush1.msra.mxu0 0.0
  %1411 = vmatprep.subr.mxu0 0.0
  %1412 = vmatpush1.msra.mxu0 0.0
  %1413 = vmatprep.subr.mxu0 0.0
  %1414 = vmatpush1.msra.mxu0 0.0
  %1415 = vmatprep.subr.mxu0 0.0
  %1416 = vmatpush1.msra.mxu0 0.0
  %1417 = vmatprep.subr.mxu0 0.0
  %1418 = vmatpush1.msra.mxu0 0.0
  %1419 = vmatprep.subr.mxu0 0.0
  %1420 = vmatpush1.msra.mxu0 0.0
  %1421 = vmatprep.mubr.f32.mxu0 0.0
  %1422 = vmatmul.mubr.f32.gmra.mrb[0].mxu0 %v1355
  %v1423 = vpop.f32.mrb[0].mxu0
  %v1424 = vadd.f32 0.0, %v1423
  %v1425 = vpop.f32.mrb[0].mxu0
  %1426 = vdwg.mxu0
  %v1427 = vadd.f32 %v1351, %v1424
  %v1428 = vmul.f32 %v1427, 0.5
  %v1429 = vtanh.pop %v1428
  %v1430 = vmul.f32 %v1429, %v37
  %v1431 = vadd.f32 %v1430, %v38
  %v1432 = vmul.f32 %v1431, %v1344
  %1434 = vrot.lane.b32.xlu0 %v1431, 64
  %v1435 = vpop.permute.xlu0 %1434
  %v1437 = vmul.f32 %v1431, %v1435
  %1439 = vrot.lane.b32.xlu0 %v1437, 32
  %v1440 = vpop.permute.xlu0 %1439
  %v1442 = vadd.f32 %v1432, %v1440
  %v1443 = vtanh.pop %v1442
  %1445 = vrot.lane.b32.xlu0 %v1443, 64
  %v1446 = vpop.permute.xlu0 %1445
  %v1448 = vmul.f32 %v1431, %v1446
  %v1449 = vld [vmem:[#allocation2 + $0x18] sm:$0xff]
  %1451 = vrot.lane.b32.xlu0 %v1448, 32
  %v1452 = vpop.permute.xlu0 %1451
  %v1453 = vsel %vm199, %v1452, 0
  %1455 = vmatprep.subr.mxu0 0.0
  %1456 = vmatpush1.msra.mxu0 %v1012
  %1457 = vmatprep.subr.mxu0 0.0
  %1458 = vmatpush1.msra.mxu0 %v1013
  %1459 = vmatprep.subr.mxu0 0.0
  %1460 = vmatpush1.msra.mxu0 %v1014
  %1461 = vmatprep.subr.mxu0 0.0
  %1462 = vmatpush1.msra.mxu0 %v1015
  %1463 = vmatprep.subr.mxu0 0.0
  %1464 = vmatpush1.msra.mxu0 0.0
  %1465 = vmatprep.subr.mxu0 0.0
  %1466 = vmatpush1.msra.mxu0 0.0
  %1467 = vmatprep.subr.mxu0 0.0
  %1468 = vmatpush1.msra.mxu0 0.0
  %1469 = vmatprep.subr.mxu0 0.0
  %1470 = vmatpush1.msra.mxu0 0.0
  %1471 = vmatprep.subr.mxu0 0.0
  %1472 = vmatpush1.msra.mxu0 0.0
  %1473 = vmatprep.subr.mxu0 0.0
  %1474 = vmatpush1.msra.mxu0 0.0
  %1475 = vmatprep.subr.mxu0 0.0
  %1476 = vmatpush1.msra.mxu0 0.0
  %1477 = vmatprep.subr.mxu0 0.0
  %1478 = vmatpush1.msra.mxu0 0.0
  %1479 = vmatprep.subr.mxu0 0.0
  %1480 = vmatpush1.msra.mxu0 0.0
  %1481 = vmatprep.subr.mxu0 0.0
  %1482 = vmatpush1.msra.mxu0 0.0
  %1483 = vmatprep.subr.mxu0 0.0
  %1484 = vmatpush1.msra.mxu0 0.0
  %1485 = vmatprep.subr.mxu0 0.0
  %1486 = vmatpush1.msra.mxu0 0.0
  %1487 = vmatprep.subr.mxu0 0.0
  %1488 = vmatpush1.msra.mxu0 0.0
  %1489 = vmatprep.subr.mxu0 0.0
  %1490 = vmatpush1.msra.mxu0 0.0
  %1491 = vmatprep.subr.mxu0 0.0
  %1492 = vmatpush1.msra.mxu0 0.0
  %1493 = vmatprep.subr.mxu0 0.0
  %1494 = vmatpush1.msra.mxu0 0.0
  %1495 = vmatprep.subr.mxu0 0.0
  %1496 = vmatpush1.msra.mxu0 0.0
  %1497 = vmatprep.subr.mxu0 0.0
  %1498 = vmatpush1.msra.mxu0 0.0
  %1499 = vmatprep.subr.mxu0 0.0
  %1500 = vmatpush1.msra.mxu0 0.0
  %1501 = vmatprep.subr.mxu0 0.0
  %1502 = vmatpush1.msra.mxu0 0.0
  %1503 = vmatprep.subr.mxu0 0.0
  %1504 = vmatpush1.msra.mxu0 0.0
  %1505 = vmatprep.subr.mxu0 0.0
  %1506 = vmatpush1.msra.mxu0 0.0
  %1507 = vmatprep.subr.mxu0 0.0
  %1508 = vmatpush1.msra.mxu0 0.0
  %1509 = vmatprep.subr.mxu0 0.0
  %1510 = vmatpush1.msra.mxu0 0.0
  %1511 = vmatprep.subr.mxu0 0.0
  %1512 = vmatpush1.msra.mxu0 0.0
  %1513 = vmatprep.subr.mxu0 0.0
  %1514 = vmatpush1.msra.mxu0 0.0
  %1515 = vmatprep.subr.mxu0 0.0
  %1516 = vmatpush1.msra.mxu0 0.0
  %1517 = vmatprep.subr.mxu0 0.0
  %1518 = vmatpush1.msra.mxu0 0.0
  %1519 = vmatprep.mubr.f32.mxu0 0.0
  %1520 = vmatmul.mubr.f32.gmra.mrb[0].mxu0 %v1453
  %v1521 = vpop.f32.mrb[0].mxu0
  %v1522 = vadd.f32 0.0, %v1521
  %v1523 = vpop.f32.mrb[0].mxu0
  %1524 = vdwg.mxu0
  %v1525 = vadd.f32 %v1449, %v1522
  %v1526 = vmul.f32 %v1525, 0.5
  %v1527 = vtanh.pop %v1526
  %v1528 = vmul.f32 %v1527, %v37
  %v1529 = vadd.f32 %v1528, %v38
  %v1530 = vmul.f32 %v1529, %v1442
  %1532 = vrot.lane.b32.xlu0 %v1529, 64
  %v1533 = vpop.permute.xlu0 %1532
  %v1535 = vmul.f32 %v1529, %v1533
  %1537 = vrot.lane.b32.xlu0 %v1535, 32
  %v1538 = vpop.permute.xlu0 %1537
  %v1540 = vadd.f32 %v1530, %v1538
  %v1541 = vtanh.pop %v1540
  %1543 = vrot.lane.b32.xlu0 %v1541, 64
  %v1544 = vpop.permute.xlu0 %1543
  %v1546 = vmul.f32 %v1529, %v1544
  %v1547 = vld [vmem:[#allocation2 + $0x20] sm:$0xff]
  %1549 = vrot.lane.b32.xlu0 %v1546, 32
  %v1550 = vpop.permute.xlu0 %1549
  %v1551 = vsel %vm199, %v1550, 0
  %1553 = vmatprep.subr.mxu0 0.0
  %1554 = vmatpush1.msra.mxu0 %v1012
  %1555 = vmatprep.subr.mxu0 0.0
  %1556 = vmatpush1.msra.mxu0 %v1013
  %1557 = vmatprep.subr.mxu0 0.0
  %1558 = vmatpush1.msra.mxu0 %v1014
  %1559 = vmatprep.subr.mxu0 0.0
  %1560 = vmatpush1.msra.mxu0 %v1015
  %1561 = vmatprep.subr.mxu0 0.0
  %1562 = vmatpush1.msra.mxu0 0.0
  %1563 = vmatprep.subr.mxu0 0.0
  %1564 = vmatpush1.msra.mxu0 0.0
  %1565 = vmatprep.subr.mxu0 0.0
  %1566 = vmatpush1.msra.mxu0 0.0
  %1567 = vmatprep.subr.mxu0 0.0
  %1568 = vmatpush1.msra.mxu0 0.0
  %1569 = vmatprep.subr.mxu0 0.0
  %1570 = vmatpush1.msra.mxu0 0.0
  %1571 = vmatprep.subr.mxu0 0.0
  %1572 = vmatpush1.msra.mxu0 0.0
  %1573 = vmatprep.subr.mxu0 0.0
  %1574 = vmatpush1.msra.mxu0 0.0
  %1575 = vmatprep.subr.mxu0 0.0
  %1576 = vmatpush1.msra.mxu0 0.0
  %1577 = vmatprep.subr.mxu0 0.0
  %1578 = vmatpush1.msra.mxu0 0.0
  %1579 = vmatprep.subr.mxu0 0.0
  %1580 = vmatpush1.msra.mxu0 0.0
  %1581 = vmatprep.subr.mxu0 0.0
  %1582 = vmatpush1.msra.mxu0 0.0
  %1583 = vmatprep.subr.mxu0 0.0
  %1584 = vmatpush1.msra.mxu0 0.0
  %1585 = vmatprep.subr.mxu0 0.0
  %1586 = vmatpush1.msra.mxu0 0.0
  %1587 = vmatprep.subr.mxu0 0.0
  %1588 = vmatpush1.msra.mxu0 0.0
  %1589 = vmatprep.subr.mxu0 0.0
  %1590 = vmatpush1.msra.mxu0 0.0
  %1591 = vmatprep.subr.mxu0 0.0
  %1592 = vmatpush1.msra.mxu0 0.0
  %1593 = vmatprep.subr.mxu0 0.0
  %1594 = vmatpush1.msra.mxu0 0.0
  %1595 = vmatprep.subr.mxu0 0.0
  %1596 = vmatpush1.msra.mxu0 0.0
  %1597 = vmatprep.subr.mxu0 0.0
  %1598 = vmatpush1.msra.mxu0 0.0
  %1599 = vmatprep.subr.mxu0 0.0
  %1600 = vmatpush1.msra.mxu0 0.0
  %1601 = vmatprep.subr.mxu0 0.0
  %1602 = vmatpush1.msra.mxu0 0.0
  %1603 = vmatprep.subr.mxu0 0.0
  %1604 = vmatpush1.msra.mxu0 0.0
  %1605 = vmatprep.subr.mxu0 0.0
  %1606 = vmatpush1.msra.mxu0 0.0
  %1607 = vmatprep.subr.mxu0 0.0
  %1608 = vmatpush1.msra.mxu0 0.0
  %1609 = vmatprep.subr.mxu0 0.0
  %1610 = vmatpush1.msra.mxu0 0.0
  %1611 = vmatprep.subr.mxu0 0.0
  %1612 = vmatpush1.msra.mxu0 0.0
  %1613 = vmatprep.subr.mxu0 0.0
  %1614 = vmatpush1.msra.mxu0 0.0
  %1615 = vmatprep.subr.mxu0 0.0
  %1616 = vmatpush1.msra.mxu0 0.0
  %1617 = vmatprep.mubr.f32.mxu0 0.0
  %1618 = vmatmul.mubr.f32.gmra.mrb[0].mxu0 %v1551
  %v1619 = vpop.f32.mrb[0].mxu0
  %v1620 = vadd.f32 0.0, %v1619
  %v1621 = vpop.f32.mrb[0].mxu0
  %1622 = vdwg.mxu0
  %v1623 = vadd.f32 %v1547, %v1620
  %v1624 = vmul.f32 %v1623, 0.5
  %v1625 = vtanh.pop %v1624
  %v1626 = vmul.f32 %v1625, %v37
  %v1627 = vadd.f32 %v1626, %v38
  %v1628 = vmul.f32 %v1627, %v1540
  %1630 = vrot.lane.b32.xlu0 %v1627, 64
  %v1631 = vpop.permute.xlu0 %1630
  %v1633 = vmul.f32 %v1627, %v1631
  %1635 = vrot.lane.b32.xlu0 %v1633, 32
  %v1636 = vpop.permute.xlu0 %1635
  %v1638 = vadd.f32 %v1628, %v1636
  %v1639 = vtanh.pop %v1638
  %1641 = vrot.lane.b32.xlu0 %v1639, 64
  %v1642 = vpop.permute.xlu0 %1641
  %v1644 = vmul.f32 %v1627, %v1642
  %v1645 = vld [vmem:[#allocation2 + $0x28] sm:$0xff]
  %1647 = vrot.lane.b32.xlu0 %v1644, 32
  %v1648 = vpop.permute.xlu0 %1647
  %v1649 = vsel %vm199, %v1648, 0
  %1651 = vmatprep.subr.mxu0 0.0
  %1652 = vmatpush1.msra.mxu0 %v1012
  %1653 = vmatprep.subr.mxu0 0.0
  %1654 = vmatpush1.msra.mxu0 %v1013
  %1655 = vmatprep.subr.mxu0 0.0
  %1656 = vmatpush1.msra.mxu0 %v1014
  %1657 = vmatprep.subr.mxu0 0.0
  %1658 = vmatpush1.msra.mxu0 %v1015
  %1659 = vmatprep.subr.mxu0 0.0
  %1660 = vmatpush1.msra.mxu0 0.0
  %1661 = vmatprep.subr.mxu0 0.0
  %1662 = vmatpush1.msra.mxu0 0.0
  %1663 = vmatprep.subr.mxu0 0.0
  %1664 = vmatpush1.msra.mxu0 0.0
  %1665 = vmatprep.subr.mxu0 0.0
  %1666 = vmatpush1.msra.mxu0 0.0
  %1667 = vmatprep.subr.mxu0 0.0
  %1668 = vmatpush1.msra.mxu0 0.0
  %1669 = vmatprep.subr.mxu0 0.0
  %1670 = vmatpush1.msra.mxu0 0.0
  %1671 = vmatprep.subr.mxu0 0.0
  %1672 = vmatpush1.msra.mxu0 0.0
  %1673 = vmatprep.subr.mxu0 0.0
  %1674 = vmatpush1.msra.mxu0 0.0
  %1675 = vmatprep.subr.mxu0 0.0
  %1676 = vmatpush1.msra.mxu0 0.0
  %1677 = vmatprep.subr.mxu0 0.0
  %1678 = vmatpush1.msra.mxu0 0.0
  %1679 = vmatprep.subr.mxu0 0.0
  %1680 = vmatpush1.msra.mxu0 0.0
  %1681 = vmatprep.subr.mxu0 0.0
  %1682 = vmatpush1.msra.mxu0 0.0
  %1683 = vmatprep.subr.mxu0 0.0
  %1684 = vmatpush1.msra.mxu0 0.0
  %1685 = vmatprep.subr.mxu0 0.0
  %1686 = vmatpush1.msra.mxu0 0.0
  %1687 = vmatprep.subr.mxu0 0.0
  %1688 = vmatpush1.msra.mxu0 0.0
  %1689 = vmatprep.subr.mxu0 0.0
  %1690 = vmatpush1.msra.mxu0 0.0
  %1691 = vmatprep.subr.mxu0 0.0
  %1692 = vmatpush1.msra.mxu0 0.0
  %1693 = vmatprep.subr.mxu0 0.0
  %1694 = vmatpush1.msra.mxu0 0.0
  %1695 = vmatprep.subr.mxu0 0.0
  %1696 = vmatpush1.msra.mxu0 0.0
  %1697 = vmatprep.subr.mxu0 0.0
  %1698 = vmatpush1.msra.mxu0 0.0
  %1699 = vmatprep.subr.mxu0 0.0
  %1700 = vmatpush1.msra.mxu0 0.0
  %1701 = vmatprep.subr.mxu0 0.0
  %1702 = vmatpush1.msra.mxu0 0.0
  %1703 = vmatprep.subr.mxu0 0.0
  %1704 = vmatpush1.msra.mxu0 0.0
  %1705 = vmatprep.subr.mxu0 0.0
  %1706 = vmatpush1.msra.mxu0 0.0
  %1707 = vmatprep.subr.mxu0 0.0
  %1708 = vmatpush1.msra.mxu0 0.0
  %1709 = vmatprep.subr.mxu0 0.0
  %1710 = vmatpush1.msra.mxu0 0.0
  %1711 = vmatprep.subr.mxu0 0.0
  %1712 = vmatpush1.msra.mxu0 0.0
  %1713 = vmatprep.subr.mxu0 0.0
  %1714 = vmatpush1.msra.mxu0 0.0
  %1715 = vmatprep.mubr.f32.mxu0 0.0
  %1716 = vmatmul.mubr.f32.gmra.mrb[0].mxu0 %v1649
  %v1717 = vpop.f32.mrb[0].mxu0
  %v1718 = vadd.f32 0.0, %v1717
  %v1719 = vpop.f32.mrb[0].mxu0
  %1720 = vdwg.mxu0
  %v1721 = vadd.f32 %v1645, %v1718
  %v1722 = vmul.f32 %v1721, 0.5
  %v1723 = vtanh.pop %v1722
  %v1724 = vmul.f32 %v1723, %v37
  %v1725 = vadd.f32 %v1724, %v38
  %v1726 = vmul.f32 %v1725, %v1638
  %1728 = vrot.lane.b32.xlu0 %v1725, 64
  %v1729 = vpop.permute.xlu0 %1728
  %v1731 = vmul.f32 %v1725, %v1729
  %1733 = vrot.lane.b32.xlu0 %v1731, 32
  %v1734 = vpop.permute.xlu0 %1733
  %v1736 = vadd.f32 %v1726, %v1734
  %v1737 = vtanh.pop %v1736
  %1739 = vrot.lane.b32.xlu0 %v1737, 64
  %v1740 = vpop.permute.xlu0 %1739
  %v1742 = vmul.f32 %v1725, %v1740
  %v1743 = vld [vmem:[#allocation2 + $0x30] sm:$0xff]
  %1745 = vrot.lane.b32.xlu0 %v1742, 32
  %v1746 = vpop.permute.xlu0 %1745
  %v1747 = vsel %vm199, %v1746, 0
  %1749 = vmatprep.subr.mxu0 0.0
  %1750 = vmatpush1.msra.mxu0 %v1012
  %1751 = vmatprep.subr.mxu0 0.0
  %1752 = vmatpush1.msra.mxu0 %v1013
  %1753 = vmatprep.subr.mxu0 0.0
  %1754 = vmatpush1.msra.mxu0 %v1014
  %1755 = vmatprep.subr.mxu0 0.0
  %1756 = vmatpush1.msra.mxu0 %v1015
  %1757 = vmatprep.subr.mxu0 0.0
  %1758 = vmatpush1.msra.mxu0 0.0
  %1759 = vmatprep.subr.mxu0 0.0
  %1760 = vmatpush1.msra.mxu0 0.0
  %1761 = vmatprep.subr.mxu0 0.0
  %1762 = vmatpush1.msra.mxu0 0.0
  %1763 = vmatprep.subr.mxu0 0.0
  %1764 = vmatpush1.msra.mxu0 0.0
  %1765 = vmatprep.subr.mxu0 0.0
  %1766 = vmatpush1.msra.mxu0 0.0
  %1767 = vmatprep.subr.mxu0 0.0
  %1768 = vmatpush1.msra.mxu0 0.0
  %1769 = vmatprep.subr.mxu0 0.0
  %1770 = vmatpush1.msra.mxu0 0.0
  %1771 = vmatprep.subr.mxu0 0.0
  %1772 = vmatpush1.msra.mxu0 0.0
  %1773 = vmatprep.subr.mxu0 0.0
  %1774 = vmatpush1.msra.mxu0 0.0
  %1775 = vmatprep.subr.mxu0 0.0
  %1776 = vmatpush1.msra.mxu0 0.0
  %1777 = vmatprep.subr.mxu0 0.0
  %1778 = vmatpush1.msra.mxu0 0.0
  %1779 = vmatprep.subr.mxu0 0.0
  %1780 = vmatpush1.msra.mxu0 0.0
  %1781 = vmatprep.subr.mxu0 0.0
  %1782 = vmatpush1.msra.mxu0 0.0
  %1783 = vmatprep.subr.mxu0 0.0
  %1784 = vmatpush1.msra.mxu0 0.0
  %1785 = vmatprep.subr.mxu0 0.0
  %1786 = vmatpush1.msra.mxu0 0.0
  %1787 = vmatprep.subr.mxu0 0.0
  %1788 = vmatpush1.msra.mxu0 0.0
  %1789 = vmatprep.subr.mxu0 0.0
  %1790 = vmatpush1.msra.mxu0 0.0
  %1791 = vmatprep.subr.mxu0 0.0
  %1792 = vmatpush1.msra.mxu0 0.0
  %1793 = vmatprep.subr.mxu0 0.0
  %1794 = vmatpush1.msra.mxu0 0.0
  %1795 = vmatprep.subr.mxu0 0.0
  %1796 = vmatpush1.msra.mxu0 0.0
  %1797 = vmatprep.subr.mxu0 0.0
  %1798 = vmatpush1.msra.mxu0 0.0
  %1799 = vmatprep.subr.mxu0 0.0
  %1800 = vmatpush1.msra.mxu0 0.0
  %1801 = vmatprep.subr.mxu0 0.0
  %1802 = vmatpush1.msra.mxu0 0.0
  %1803 = vmatprep.subr.mxu0 0.0
  %1804 = vmatpush1.msra.mxu0 0.0
  %1805 = vmatprep.subr.mxu0 0.0
  %1806 = vmatpush1.msra.mxu0 0.0
  %1807 = vmatprep.subr.mxu0 0.0
  %1808 = vmatpush1.msra.mxu0 0.0
  %1809 = vmatprep.subr.mxu0 0.0
  %1810 = vmatpush1.msra.mxu0 0.0
  %1811 = vmatprep.subr.mxu0 0.0
  %1812 = vmatpush1.msra.mxu0 0.0
  %1813 = vmatprep.mubr.f32.mxu0 0.0
  %1814 = vmatmul.mubr.f32.gmra.mrb[0].mxu0 %v1747
  %v1815 = vpop.f32.mrb[0].mxu0
  %v1816 = vadd.f32 0.0, %v1815
  %v1817 = vpop.f32.mrb[0].mxu0
  %1818 = vdwg.mxu0
  %v1819 = vadd.f32 %v1743, %v1816
  %v1820 = vmul.f32 %v1819, 0.5
  %v1821 = vtanh.pop %v1820
  %v1822 = vmul.f32 %v1821, %v37
  %v1823 = vadd.f32 %v1822, %v38
  %v1824 = vmul.f32 %v1823, %v1736
  %1826 = vrot.lane.b32.xlu0 %v1823, 64
  %v1827 = vpop.permute.xlu0 %1826
  %v1829 = vmul.f32 %v1823, %v1827
  %1831 = vrot.lane.b32.xlu0 %v1829, 32
  %v1832 = vpop.permute.xlu0 %1831
  %v1834 = vadd.f32 %v1824, %v1832
  %v1835 = vtanh.pop %v1834
  %1837 = vrot.lane.b32.xlu0 %v1835, 64
  %v1838 = vpop.permute.xlu0 %1837
  %v1840 = vmul.f32 %v1823, %v1838
  %v1841 = vld [vmem:[#allocation2 + $0x38] sm:$0xff]
  %1843 = vrot.lane.b32.xlu0 %v1840, 32
  %v1844 = vpop.permute.xlu0 %1843
  %v1845 = vsel %vm199, %v1844, 0
  %1847 = vmatprep.subr.mxu0 0.0
  %1848 = vmatpush1.msra.mxu0 %v1012
  %1849 = vmatprep.subr.mxu0 0.0
  %1850 = vmatpush1.msra.mxu0 %v1013
  %1851 = vmatprep.subr.mxu0 0.0
  %1852 = vmatpush1.msra.mxu0 %v1014
  %1853 = vmatprep.subr.mxu0 0.0
  %1854 = vmatpush1.msra.mxu0 %v1015
  %1855 = vmatprep.subr.mxu0 0.0
  %1856 = vmatpush1.msra.mxu0 0.0
  %1857 = vmatprep.subr.mxu0 0.0
  %1858 = vmatpush1.msra.mxu0 0.0
  %1859 = vmatprep.subr.mxu0 0.0
  %1860 = vmatpush1.msra.mxu0 0.0
  %1861 = vmatprep.subr.mxu0 0.0
  %1862 = vmatpush1.msra.mxu0 0.0
  %1863 = vmatprep.subr.mxu0 0.0
  %1864 = vmatpush1.msra.mxu0 0.0
  %1865 = vmatprep.subr.mxu0 0.0
  %1866 = vmatpush1.msra.mxu0 0.0
  %1867 = vmatprep.subr.mxu0 0.0
  %1868 = vmatpush1.msra.mxu0 0.0
  %1869 = vmatprep.subr.mxu0 0.0
  %1870 = vmatpush1.msra.mxu0 0.0
  %1871 = vmatprep.subr.mxu0 0.0
  %1872 = vmatpush1.msra.mxu0 0.0
  %1873 = vmatprep.subr.mxu0 0.0
  %1874 = vmatpush1.msra.mxu0 0.0
  %1875 = vmatprep.subr.mxu0 0.0
  %1876 = vmatpush1.msra.mxu0 0.0
  %1877 = vmatprep.subr.mxu0 0.0
  %1878 = vmatpush1.msra.mxu0 0.0
  %1879 = vmatprep.subr.mxu0 0.0
  %1880 = vmatpush1.msra.mxu0 0.0
  %1881 = vmatprep.subr.mxu0 0.0
  %1882 = vmatpush1.msra.mxu0 0.0
  %1883 = vmatprep.subr.mxu0 0.0
  %1884 = vmatpush1.msra.mxu0 0.0
  %1885 = vmatprep.subr.mxu0 0.0
  %1886 = vmatpush1.msra.mxu0 0.0
  %1887 = vmatprep.subr.mxu0 0.0
  %1888 = vmatpush1.msra.mxu0 0.0
  %1889 = vmatprep.subr.mxu0 0.0
  %1890 = vmatpush1.msra.mxu0 0.0
  %1891 = vmatprep.subr.mxu0 0.0
  %1892 = vmatpush1.msra.mxu0 0.0
  %1893 = vmatprep.subr.mxu0 0.0
  %1894 = vmatpush1.msra.mxu0 0.0
  %1895 = vmatprep.subr.mxu0 0.0
  %1896 = vmatpush1.msra.mxu0 0.0
  %1897 = vmatprep.subr.mxu0 0.0
  %1898 = vmatpush1.msra.mxu0 0.0
  %1899 = vmatprep.subr.mxu0 0.0
  %1900 = vmatpush1.msra.mxu0 0.0
  %1901 = vmatprep.subr.mxu0 0.0
  %1902 = vmatpush1.msra.mxu0 0.0
  %1903 = vmatprep.subr.mxu0 0.0
  %1904 = vmatpush1.msra.mxu0 0.0
  %1905 = vmatprep.subr.mxu0 0.0
  %1906 = vmatpush1.msra.mxu0 0.0
  %1907 = vmatprep.subr.mxu0 0.0
  %1908 = vmatpush1.msra.mxu0 0.0
  %1909 = vmatprep.subr.mxu0 0.0
  %1910 = vmatpush1.msra.mxu0 0.0
  %1911 = vmatprep.mubr.f32.mxu0 0.0
  %1912 = vmatmul.mubr.f32.gmra.mrb[0].mxu0 %v1845
  %v1913 = vpop.f32.mrb[0].mxu0
  %v1914 = vadd.f32 0.0, %v1913
  %v1915 = vpop.f32.mrb[0].mxu0
  %1916 = vdwg.mxu0
  %v1917 = vadd.f32 %v1841, %v1914
  %v1918 = vmul.f32 %v1917, 0.5
  %v1919 = vtanh.pop %v1918
  %v1920 = vmul.f32 %v1919, %v37
  %v1921 = vadd.f32 %v1920, %v38
  %v1922 = vmul.f32 %v1921, %v1834
  %1924 = vrot.lane.b32.xlu0 %v1921, 64
  %v1925 = vpop.permute.xlu0 %1924
  %v1927 = vmul.f32 %v1921, %v1925
  %1929 = vrot.lane.b32.xlu0 %v1927, 32
  %v1930 = vpop.permute.xlu0 %1929
  %v1932 = vadd.f32 %v1922, %v1930
  %v1933 = vtanh.pop %v1932
  %1935 = vrot.lane.b32.xlu0 %v1933, 64
  %v1936 = vpop.permute.xlu0 %1935
  %v1938 = vmul.f32 %v1921, %v1936
  %v1939 = vld [vmem:[%s7] sm:$0xff]
  %v1940 = vld [vmem:[%s7 + $0x8] sm:$0xff]
  %v1941 = vld [vmem:[%s7 + $0x10] sm:$0xff]
  %v1942 = vld [vmem:[%s7 + $0x18] sm:$0xff]
  %v1943 = vld [vmem:[%s8] sm:$0x1]
  %v1945 = vlaneseq
  %v1946 = vshrl.u32 %v1945, 7
  %v1947 = vsub.s32 0, %v1946
  %v1948 = vrot.slane %v1943, %v1947
  %1951 = vrot.lane.b32.xlu0 %v1938, 32
  %v1952 = vpop.permute.xlu0 %1951
  %v1953 = vsel %vm199, %v1952, 0
  %1955 = vmatprep.subr.mxu0 0.0
  %1956 = vmatpush1.msra.mxu0 %v1939
  %1957 = vmatprep.subr.mxu0 0.0
  %1958 = vmatpush1.msra.mxu0 %v1940
  %1959 = vmatprep.subr.mxu0 0.0
  %1960 = vmatpush1.msra.mxu0 %v1941
  %1961 = vmatprep.subr.mxu0 0.0
  %1962 = vmatpush1.msra.mxu0 %v1942
  %1963 = vmatprep.subr.mxu0 0.0
  %1964 = vmatpush1.msra.mxu0 0.0
  %1965 = vmatprep.subr.mxu0 0.0
  %1966 = vmatpush1.msra.mxu0 0.0
  %1967 = vmatprep.subr.mxu0 0.0
  %1968 = vmatpush1.msra.mxu0 0.0
  %1969 = vmatprep.subr.mxu0 0.0
  %1970 = vmatpush1.msra.mxu0 0.0
  %1971 = vmatprep.subr.mxu0 0.0
  %1972 = vmatpush1.msra.mxu0 0.0
  %1973 = vmatprep.subr.mxu0 0.0
  %1974 = vmatpush1.msra.mxu0 0.0
  %1975 = vmatprep.subr.mxu0 0.0
  %1976 = vmatpush1.msra.mxu0 0.0
  %1977 = vmatprep.subr.mxu0 0.0
  %1978 = vmatpush1.msra.mxu0 0.0
  %1979 = vmatprep.subr.mxu0 0.0
  %1980 = vmatpush1.msra.mxu0 0.0
  %1981 = vmatprep.subr.mxu0 0.0
  %1982 = vmatpush1.msra.mxu0 0.0
  %1983 = vmatprep.subr.mxu0 0.0
  %1984 = vmatpush1.msra.mxu0 0.0
  %1985 = vmatprep.subr.mxu0 0.0
  %1986 = vmatpush1.msra.mxu0 0.0
  %1987 = vmatprep.subr.mxu0 0.0
  %1988 = vmatpush1.msra.mxu0 0.0
  %1989 = vmatprep.subr.mxu0 0.0
  %1990 = vmatpush1.msra.mxu0 0.0
  %1991 = vmatprep.subr.mxu0 0.0
  %1992 = vmatpush1.msra.mxu0 0.0
  %1993 = vmatprep.subr.mxu0 0.0
  %1994 = vmatpush1.msra.mxu0 0.0
  %1995 = vmatprep.subr.mxu0 0.0
  %1996 = vmatpush1.msra.mxu0 0.0
  %1997 = vmatprep.subr.mxu0 0.0
  %1998 = vmatpush1.msra.mxu0 0.0
  %1999 = vmatprep.subr.mxu0 0.0
  %2000 = vmatpush1.msra.mxu0 0.0
  %2001 = vmatprep.subr.mxu0 0.0
  %2002 = vmatpush1.msra.mxu0 0.0
  %2003 = vmatprep.subr.mxu0 0.0
  %2004 = vmatpush1.msra.mxu0 0.0
  %2005 = vmatprep.subr.mxu0 0.0
  %2006 = vmatpush1.msra.mxu0 0.0
  %2007 = vmatprep.subr.mxu0 0.0
  %2008 = vmatpush1.msra.mxu0 0.0
  %2009 = vmatprep.subr.mxu0 0.0
  %2010 = vmatpush1.msra.mxu0 0.0
  %2011 = vmatprep.subr.mxu0 0.0
  %2012 = vmatpush1.msra.mxu0 0.0
  %2013 = vmatprep.subr.mxu0 0.0
  %2014 = vmatpush1.msra.mxu0 0.0
  %2015 = vmatprep.subr.mxu0 0.0
  %2016 = vmatpush1.msra.mxu0 0.0
  %2017 = vmatprep.subr.mxu0 0.0
  %2018 = vmatpush1.msra.mxu0 0.0
  %2019 = vmatprep.mubr.f32.mxu0 0.0
  %2020 = vmatmul.mubr.f32.gmra.mrb[0].mxu0 %v1953
  %v2021 = vpop.f32.mrb[0].mxu0
  %v2022 = vadd.f32 %v1948, %v2021
  %v2023 = vpop.f32.mrb[0].mxu0
  %2024 = vdwg.mxu0
  %vm2025 = vcmask 31744
  %2026 = vst.msk [vmem:[%s9] sm:$0xff] %vm2025, %v2022
  // Predicated region
  $region38: #{tpu_custom_call.1} parent=0 // pred_check
    _
  $region39: #{tpu_custom_call.1} parent=0 // pred_check_branch
    %2028 = sbr.rel (0) target = $region41
  $region40: #{tpu_custom_call.1} parent=0 // pred_region
    _
  $region41: #{tpu_custom_call.1} parent=0 // pred_fallthru
    _
  // Predicated region
  $region42: #{tpu_custom_call.1} parent=0 // pred_check
    _
  $region43: #{tpu_custom_call.1} parent=0 // pred_check_branch
    %2030 = sbr.rel (0) target = $region45
  $region44: #{tpu_custom_call.1} parent=0 // pred_region
    _
  $region45: #{tpu_custom_call.1} parent=0 // pred_fallthru
    _

</llo_original>
